<compile_context>
chip_gen: v7x
topology: tpu7x:2x2x1
jax: 0.10.0
libtpu: 0.0.40
codegen_flags: <defaults>
</compile_context>

<pallas_src>
from functools import partial

import jax
import jax.numpy as jnp
from jax.experimental import pallas as pl
from jax.experimental.pallas import tpu as pltpu


# ----------------------------- Pallas kernel -----------------------------

def _bottleneck_kernel(x_ref, w1_ref, w2_ref, w3_ref,
                       s1_ref, b1_ref, s2_ref, b2_ref, s3_ref, b3_ref,
                       o_ref, h1p_ref, *, H, W, P):
    """One image per grid step.  x_ref: (H*W, Cin) bf16 NHWC-flattened,
    weights bf16, BN scale/bias f32, o_ref: (H*W, Cout) f32.
    h1p_ref: (H+2, W+2, P) f32 VMEM scratch holding the zero-padded stage-1
    activation for the 9-tap 3x3 convolution."""
    HW = H * W

    # ---- stage 1: 1x1 conv + BN1 + ReLU (MXU in bf16, f32 epilogue) ----
    x2d = x_ref[...]                                            # (HW, Cin) bf16
    a1 = jnp.dot(x2d, w1_ref[...], preferred_element_type=jnp.float32)
    h1 = jnp.maximum(a1 * s1_ref[...] + b1_ref[...], 0.0)       # (HW, P) f32

    # ---- stage 2: 3x3 conv (stride 1, pad 1) + BN2 + ReLU ----
    # Zero-pad h1 in VMEM (zeroed every step: cheap, and safe under megacore
    # grid sharding), then accumulate 9 taps, each a (HW,P)@(P,P) matmul.
    h1p_ref[...] = jnp.zeros(h1p_ref.shape, h1p_ref.dtype)
    h1p_ref[pl.ds(1, H), pl.ds(1, W), :] = h1.reshape(H, W, P)
    acc2 = jnp.zeros((HW, P), jnp.float32)
    for t in range(9):
        dy, dx = divmod(t, 3)
        tap = h1p_ref[pl.ds(dy, H), pl.ds(dx, W), :]            # (H, W, P) f32
        tap = tap.reshape(HW, P).astype(jnp.bfloat16)
        acc2 = acc2 + jnp.dot(tap, w2_ref[t],
                              preferred_element_type=jnp.float32)
    h2 = jnp.maximum(acc2 * s2_ref[...] + b2_ref[...], 0.0).astype(jnp.bfloat16)

    # ---- stage 3: 1x1 conv + BN3 + residual add + ReLU (fully fused) ----
    a3 = jnp.dot(h2, w3_ref[...], preferred_element_type=jnp.float32)
    y = a3 * s3_ref[...] + b3_ref[...] + x2d.astype(jnp.float32)
    o_ref[...] = jnp.maximum(y, 0.0).astype(o_ref.dtype)


# ----------------------------- forward wrapper -----------------------------

def _fold_bn(gamma, beta, mean, var, eps=1e-5):
    scale = gamma / jnp.sqrt(var + eps)
    return scale, beta - mean * scale


def bottleneck_forward(x_nchw, params, eps=1e-5):
    """Bottleneck.forward (stride=1, downsample=None) as one fused Pallas kernel."""
    n, cin, h, w = x_nchw.shape
    w1, w2, w3 = params["w1"], params["w2"], params["w3"]
    planes = w1.shape[0]
    cout = w3.shape[0]
    assert cout == cin, "identity residual requires inplanes == planes*4"
    # TODO(synk): stride > 1 and the optional downsample branch (conv1x1 + BN
    # on the identity path) are not wired up (module defaults: stride=1,
    # downsample=None).

    # Layout glue: NCHW -> NHWC once (in a full network this is amortized
    # across all blocks), flatten spatial, cast activations to bf16.
    x3d = (jnp.transpose(x_nchw, (0, 2, 3, 1))
           .reshape(n, h * w, cin)
           .astype(jnp.bfloat16))

    s1, b1 = _fold_bn(*params["bn1"], eps)
    s2, b2 = _fold_bn(*params["bn2"], eps)
    s3, b3 = _fold_bn(*params["bn3"], eps)

    w1m = w1.reshape(planes, cin).T.astype(jnp.bfloat16)             # (Cin, P)
    w2m = (jnp.transpose(w2, (2, 3, 1, 0))                           # (ky,kx,in,out)
           .reshape(9, planes, planes).astype(jnp.bfloat16))         # (9, P, P)
    w3m = w3.reshape(cout, planes).T.astype(jnp.bfloat16)            # (P, Cout)

    def v32(v):
        return v.reshape(1, -1).astype(jnp.float32)

    grid_spec = pltpu.PrefetchScalarGridSpec(
        num_scalar_prefetch=0,
        grid=(n,),
        in_specs=[
            pl.BlockSpec((pl.Squeezed(), h * w, cin), lambda b: (b, 0, 0)),   # x
            pl.BlockSpec((cin, planes), lambda b: (0, 0)),                    # w1
            pl.BlockSpec((9, planes, planes), lambda b: (0, 0, 0)),           # w2 taps
            pl.BlockSpec((planes, cout), lambda b: (0, 0)),                   # w3
            pl.BlockSpec((1, planes), lambda b: (0, 0)),                      # s1
            pl.BlockSpec((1, planes), lambda b: (0, 0)),                      # b1
            pl.BlockSpec((1, planes), lambda b: (0, 0)),                      # s2
            pl.BlockSpec((1, planes), lambda b: (0, 0)),                      # b2
            pl.BlockSpec((1, cout), lambda b: (0, 0)),                        # s3
            pl.BlockSpec((1, cout), lambda b: (0, 0)),                        # b3
        ],
        out_specs=pl.BlockSpec((pl.Squeezed(), h * w, cout), lambda b: (b, 0, 0)),
        scratch_shapes=[pltpu.VMEM((h + 2, w + 2, planes), jnp.float32)],
    )

    out3d = pl.pallas_call(
        partial(_bottleneck_kernel, H=h, W=w, P=planes),
        out_shape=jax.ShapeDtypeStruct((n, h * w, cout), jnp.float32),
        grid_spec=grid_spec,
        compiler_params=pltpu.CompilerParams(
            dimension_semantics=("parallel",),
        ),
    )(x3d, w1m, w2m, w3m,
      v32(s1), v32(b1), v32(s2), v32(b2), v32(s3), v32(b3))

    # NHWC -> NCHW at the module interface.
    return out3d.reshape(n, h, w, cout).transpose(0, 3, 1, 2)


# ----------------------------- pure-JAX reference -----------------------------

def bottleneck_ref(x, params, eps=1e-5):
    hp = jax.lax.Precision.HIGHEST

    def conv(y, wt, stride=1, padd=0):
        return jax.lax.conv_general_dilated(
            y, wt, window_strides=(stride, stride),
            padding=((padd, padd), (padd, padd)),
            dimension_numbers=("NCHW", "OIHW", "NCHW"),
            precision=hp)

    def bn(y, p):
        g, b, mu, var = p
        inv = g / jnp.sqrt(var + eps)
        return y * inv[None, :, None, None] + (b - mu * inv)[None, :, None, None]

    out = jax.nn.relu(bn(conv(x, params["w1"]), params["bn1"]))
    out = jax.nn.relu(bn(conv(out, params["w2"], 1, 1), params["bn2"]))
    out = bn(conv(out, params["w3"]), params["bn3"])
    return jax.nn.relu(out + x)


# ----------------------------- demo / check -----------------------------

if __name__ == "__main__":
    key = jax.random.PRNGKey(0)
    keys = jax.random.split(key, 8)

    n, inplanes, hgt, wid = 2, 64, 8, 8
    planes = 16
    out_ch = planes * 4  # == inplanes -> stride=1, downsample=None path

    x = jax.random.normal(keys[0], (n, inplanes, hgt, wid), dtype=jnp.float32)

    def bn_params(k, c):
        k1, k2, k3, k4 = jax.random.split(k, 4)
        gamma = 1.0 + 0.1 * jax.random.normal(k1, (c,), jnp.float32)
        beta = 0.1 * jax.random.normal(k2, (c,), jnp.float32)
        mean = 0.1 * jax.random.normal(k3, (c,), jnp.float32)
        var = 1.0 + 0.1 * jax.random.uniform(k4, (c,), jnp.float32)
        return (gamma, beta, mean, var)

    params = {
        "w1": (inplanes ** -0.5) * jax.random.normal(
            keys[1], (planes, inplanes, 1, 1), jnp.float32),
        "w2": ((9 * planes) ** -0.5) * jax.random.normal(
            keys[2], (planes, planes, 3, 3), jnp.float32),
        "w3": (planes ** -0.5) * jax.random.normal(
            keys[3], (out_ch, planes, 1, 1), jnp.float32),
        "bn1": bn_params(keys[4], planes),
        "bn2": bn_params(keys[5], planes),
        "bn3": bn_params(keys[6], out_ch),
    }

    y = jax.block_until_ready(bottleneck_forward(x, params))
    y_ref = jax.block_until_ready(bottleneck_ref(x, params))

    assert y.shape == y_ref.shape == (n, out_ch, hgt, wid)
    assert y.dtype == jnp.float32
    # bf16 MXU inputs -> tolerance covers bf16 rounding vs. the f32 HIGHEST ref.
    assert bool(jnp.allclose(y, y_ref, atol=6e-2, rtol=2e-2)), (
        float(jnp.max(jnp.abs(y - y_ref))))
    print("KERNEL_OK")
</pallas_src>

<mosaic_0001>
module attributes {stable_mosaic.version = 11 : i64} {
  func.func @_bottleneck_kernel(%arg0: i32, %arg1: memref<1x64x64xbf16, #tpu.memory_space<vmem>>, %arg2: memref<64x16xbf16, #tpu.memory_space<vmem>>, %arg3: memref<9x16x16xbf16, #tpu.memory_space<vmem>>, %arg4: memref<16x64xbf16, #tpu.memory_space<vmem>>, %arg5: memref<1x16xf32, #tpu.memory_space<vmem>>, %arg6: memref<1x16xf32, #tpu.memory_space<vmem>>, %arg7: memref<1x16xf32, #tpu.memory_space<vmem>>, %arg8: memref<1x16xf32, #tpu.memory_space<vmem>>, %arg9: memref<1x64xf32, #tpu.memory_space<vmem>>, %arg10: memref<1x64xf32, #tpu.memory_space<vmem>>, %arg11: memref<1x64x64xf32, #tpu.memory_space<vmem>>, %arg12: memref<10x10x16xf32, #tpu.memory_space<vmem>>) attributes {dimension_semantics = [#tpu.dimension_semantics<parallel>], iteration_bounds = array<i64: 2>, scalar_prefetch = 0 : i64, scratch_operands = 1 : i64, tpu.core_type = #tpu.core_type<tc>, window_params = [{transform_indices = @transform_0, window_bounds = array<i64: 1, 64, 64>}, {pipeline_mode = #tpu.pipeline_mode<synchronous>, transform_indices = @transform_1, window_bounds = array<i64: 64, 16>}, {pipeline_mode = #tpu.pipeline_mode<synchronous>, transform_indices = @transform_2, window_bounds = array<i64: 9, 16, 16>}, {pipeline_mode = #tpu.pipeline_mode<synchronous>, transform_indices = @transform_3, window_bounds = array<i64: 16, 64>}, {pipeline_mode = #tpu.pipeline_mode<synchronous>, transform_indices = @transform_4, window_bounds = array<i64: 1, 16>}, {pipeline_mode = #tpu.pipeline_mode<synchronous>, transform_indices = @transform_5, window_bounds = array<i64: 1, 16>}, {pipeline_mode = #tpu.pipeline_mode<synchronous>, transform_indices = @transform_6, window_bounds = array<i64: 1, 16>}, {pipeline_mode = #tpu.pipeline_mode<synchronous>, transform_indices = @transform_7, window_bounds = array<i64: 1, 16>}, {pipeline_mode = #tpu.pipeline_mode<synchronous>, transform_indices = @transform_8, window_bounds = array<i64: 1, 64>}, {pipeline_mode = #tpu.pipeline_mode<synchronous>, transform_indices = @transform_9, window_bounds = array<i64: 1, 64>}, {transform_indices = @transform_10, window_bounds = array<i64: 1, 64, 64>}]} {
    %c0 = arith.constant 0 : index
    %c0_0 = arith.constant 0 : index
    %c0_1 = arith.constant 0 : index
    %0 = vector.load %arg1[%c0, %c0_0, %c0_1] : memref<1x64x64xbf16, #tpu.memory_space<vmem>>, vector<1x64x64xbf16>
    %1 = vector.shape_cast %0 : vector<1x64x64xbf16> to vector<64x64xbf16>
    %c0_2 = arith.constant 0 : index
    %c0_3 = arith.constant 0 : index
    %2 = vector.load %arg2[%c0_2, %c0_3] : memref<64x16xbf16, #tpu.memory_space<vmem>>, vector<64x16xbf16>
    %cst = arith.constant dense<0.000000e+00> : vector<64x16xf32>
    %3 = tpu.matmul %1, %2, %cst {dimension_numbers = #tpu.dot_dimension_numbers<[1], [0], [0], [1], [0, 0, 1, 1], [], []>} : vector<64x64xbf16>, vector<64x16xbf16>, vector<64x16xf32> -> vector<64x16xf32>
    %c0_4 = arith.constant 0 : index
    %c0_5 = arith.constant 0 : index
    %4 = vector.load %arg5[%c0_4, %c0_5] : memref<1x16xf32, #tpu.memory_space<vmem>>, vector<1x16xf32>
    %5 = vector.broadcast %4 : vector<1x16xf32> to vector<64x16xf32>
    %6 = arith.mulf %3, %5 : vector<64x16xf32>
    %c0_6 = arith.constant 0 : index
    %c0_7 = arith.constant 0 : index
    %7 = vector.load %arg6[%c0_6, %c0_7] : memref<1x16xf32, #tpu.memory_space<vmem>>, vector<1x16xf32>
    %8 = vector.broadcast %7 : vector<1x16xf32> to vector<64x16xf32>
    %9 = arith.addf %6, %8 : vector<64x16xf32>
    %cst_8 = arith.constant 0.000000e+00 : f32
    %10 = vector.broadcast %cst_8 : f32 to vector<64x16xf32>
    %11 = arith.maximumf %9, %10 : vector<64x16xf32>
    %cst_9 = arith.constant 0.000000e+00 : f32
    %12 = vector.broadcast %cst_9 : f32 to vector<10x10x16xf32>
    %c0_10 = arith.constant 0 : index
    %c0_11 = arith.constant 0 : index
    %c0_12 = arith.constant 0 : index
    %13 = vector.load %arg12[%c0_10, %c0_11, %c0_12] : memref<10x10x16xf32, #tpu.memory_space<vmem>>, vector<10x10x16xf32>
    tpu.vector_store %arg12[%c0_10, %c0_11, %c0_12], %12 {strides = array<i32>} : memref<10x10x16xf32, #tpu.memory_space<vmem>>, vector<10x10x16xf32>,
    %14 = vector.shape_cast %11 : vector<64x16xf32> to vector<8x8x16xf32>
    %c1 = arith.constant 1 : index
    %c1_13 = arith.constant 1 : index
    %c0_14 = arith.constant 0 : index
    %15 = vector.load %arg12[%c1, %c1_13, %c0_14] : memref<10x10x16xf32, #tpu.memory_space<vmem>>, vector<8x8x16xf32>
    tpu.vector_store %arg12[%c1, %c1_13, %c0_14], %14 {strides = array<i32>} : memref<10x10x16xf32, #tpu.memory_space<vmem>>, vector<8x8x16xf32>,
    %cst_15 = arith.constant 0.000000e+00 : f32
    %16 = vector.broadcast %cst_15 : f32 to vector<64x16xf32>
    %c0_16 = arith.constant 0 : index
    %c0_17 = arith.constant 0 : index
    %c0_18 = arith.constant 0 : index
    %17 = vector.load %arg12[%c0_16, %c0_17, %c0_18] : memref<10x10x16xf32, #tpu.memory_space<vmem>>, vector<8x8x16xf32>
    %18 = vector.shape_cast %17 : vector<8x8x16xf32> to vector<64x16xf32>
    %19 = arith.truncf %18 : vector<64x16xf32> to vector<64x16xbf16>
    %c0_19 = arith.constant 0 : index
    %c0_20 = arith.constant 0 : index
    %c0_21 = arith.constant 0 : index
    %20 = vector.load %arg3[%c0_19, %c0_20, %c0_21] : memref<9x16x16xbf16, #tpu.memory_space<vmem>>, vector<1x16x16xbf16>
    %21 = vector.shape_cast %20 : vector<1x16x16xbf16> to vector<16x16xbf16>
    %cst_22 = arith.constant dense<0.000000e+00> : vector<64x16xf32>
    %22 = tpu.matmul %19, %21, %cst_22 {dimension_numbers = #tpu.dot_dimension_numbers<[1], [0], [0], [1], [0, 0, 1, 1], [], []>} : vector<64x16xbf16>, vector<16x16xbf16>, vector<64x16xf32> -> vector<64x16xf32>
    %23 = arith.addf %16, %22 : vector<64x16xf32>
    %c0_23 = arith.constant 0 : index
    %c1_24 = arith.constant 1 : index
    %c0_25 = arith.constant 0 : index
    %24 = vector.load %arg12[%c0_23, %c1_24, %c0_25] : memref<10x10x16xf32, #tpu.memory_space<vmem>>, vector<8x8x16xf32>
    %25 = vector.shape_cast %24 : vector<8x8x16xf32> to vector<64x16xf32>
    %26 = arith.truncf %25 : vector<64x16xf32> to vector<64x16xbf16>
    %c1_26 = arith.constant 1 : index
    %c0_27 = arith.constant 0 : index
    %c0_28 = arith.constant 0 : index
    %27 = vector.load %arg3[%c1_26, %c0_27, %c0_28] : memref<9x16x16xbf16, #tpu.memory_space<vmem>>, vector<1x16x16xbf16>
    %28 = vector.shape_cast %27 : vector<1x16x16xbf16> to vector<16x16xbf16>
    %cst_29 = arith.constant dense<0.000000e+00> : vector<64x16xf32>
    %29 = tpu.matmul %26, %28, %cst_29 {dimension_numbers = #tpu.dot_dimension_numbers<[1], [0], [0], [1], [0, 0, 1, 1], [], []>} : vector<64x16xbf16>, vector<16x16xbf16>, vector<64x16xf32> -> vector<64x16xf32>
    %30 = arith.addf %23, %29 : vector<64x16xf32>
    %c0_30 = arith.constant 0 : index
    %c2 = arith.constant 2 : index
    %c0_31 = arith.constant 0 : index
    %31 = vector.load %arg12[%c0_30, %c2, %c0_31] : memref<10x10x16xf32, #tpu.memory_space<vmem>>, vector<8x8x16xf32>
    %32 = vector.shape_cast %31 : vector<8x8x16xf32> to vector<64x16xf32>
    %33 = arith.truncf %32 : vector<64x16xf32> to vector<64x16xbf16>
    %c2_32 = arith.constant 2 : index
    %c0_33 = arith.constant 0 : index
    %c0_34 = arith.constant 0 : index
    %34 = vector.load %arg3[%c2_32, %c0_33, %c0_34] : memref<9x16x16xbf16, #tpu.memory_space<vmem>>, vector<1x16x16xbf16>
    %35 = vector.shape_cast %34 : vector<1x16x16xbf16> to vector<16x16xbf16>
    %cst_35 = arith.constant dense<0.000000e+00> : vector<64x16xf32>
    %36 = tpu.matmul %33, %35, %cst_35 {dimension_numbers = #tpu.dot_dimension_numbers<[1], [0], [0], [1], [0, 0, 1, 1], [], []>} : vector<64x16xbf16>, vector<16x16xbf16>, vector<64x16xf32> -> vector<64x16xf32>
    %37 = arith.addf %30, %36 : vector<64x16xf32>
    %c1_36 = arith.constant 1 : index
    %c0_37 = arith.constant 0 : index
    %c0_38 = arith.constant 0 : index
    %38 = vector.load %arg12[%c1_36, %c0_37, %c0_38] : memref<10x10x16xf32, #tpu.memory_space<vmem>>, vector<8x8x16xf32>
    %39 = vector.shape_cast %38 : vector<8x8x16xf32> to vector<64x16xf32>
    %40 = arith.truncf %39 : vector<64x16xf32> to vector<64x16xbf16>
    %c3 = arith.constant 3 : index
    %c0_39 = arith.constant 0 : index
    %c0_40 = arith.constant 0 : index
    %41 = vector.load %arg3[%c3, %c0_39, %c0_40] : memref<9x16x16xbf16, #tpu.memory_space<vmem>>, vector<1x16x16xbf16>
    %42 = vector.shape_cast %41 : vector<1x16x16xbf16> to vector<16x16xbf16>
    %cst_41 = arith.constant dense<0.000000e+00> : vector<64x16xf32>
    %43 = tpu.matmul %40, %42, %cst_41 {dimension_numbers = #tpu.dot_dimension_numbers<[1], [0], [0], [1], [0, 0, 1, 1], [], []>} : vector<64x16xbf16>, vector<16x16xbf16>, vector<64x16xf32> -> vector<64x16xf32>
    %44 = arith.addf %37, %43 : vector<64x16xf32>
    %c1_42 = arith.constant 1 : index
    %c1_43 = arith.constant 1 : index
    %c0_44 = arith.constant 0 : index
    %45 = vector.load %arg12[%c1_42, %c1_43, %c0_44] : memref<10x10x16xf32, #tpu.memory_space<vmem>>, vector<8x8x16xf32>
    %46 = vector.shape_cast %45 : vector<8x8x16xf32> to vector<64x16xf32>
    %47 = arith.truncf %46 : vector<64x16xf32> to vector<64x16xbf16>
    %c4 = arith.constant 4 : index
    %c0_45 = arith.constant 0 : index
    %c0_46 = arith.constant 0 : index
    %48 = vector.load %arg3[%c4, %c0_45, %c0_46] : memref<9x16x16xbf16, #tpu.memory_space<vmem>>, vector<1x16x16xbf16>
    %49 = vector.shape_cast %48 : vector<1x16x16xbf16> to vector<16x16xbf16>
    %cst_47 = arith.constant dense<0.000000e+00> : vector<64x16xf32>
    %50 = tpu.matmul %47, %49, %cst_47 {dimension_numbers = #tpu.dot_dimension_numbers<[1], [0], [0], [1], [0, 0, 1, 1], [], []>} : vector<64x16xbf16>, vector<16x16xbf16>, vector<64x16xf32> -> vector<64x16xf32>
    %51 = arith.addf %44, %50 : vector<64x16xf32>
    %c1_48 = arith.constant 1 : index
    %c2_49 = arith.constant 2 : index
    %c0_50 = arith.constant 0 : index
    %52 = vector.load %arg12[%c1_48, %c2_49, %c0_50] : memref<10x10x16xf32, #tpu.memory_space<vmem>>, vector<8x8x16xf32>
    %53 = vector.shape_cast %52 : vector<8x8x16xf32> to vector<64x16xf32>
    %54 = arith.truncf %53 : vector<64x16xf32> to vector<64x16xbf16>
    %c5 = arith.constant 5 : index
    %c0_51 = arith.constant 0 : index
    %c0_52 = arith.constant 0 : index
    %55 = vector.load %arg3[%c5, %c0_51, %c0_52] : memref<9x16x16xbf16, #tpu.memory_space<vmem>>, vector<1x16x16xbf16>
    %56 = vector.shape_cast %55 : vector<1x16x16xbf16> to vector<16x16xbf16>
    %cst_53 = arith.constant dense<0.000000e+00> : vector<64x16xf32>
    %57 = tpu.matmul %54, %56, %cst_53 {dimension_numbers = #tpu.dot_dimension_numbers<[1], [0], [0], [1], [0, 0, 1, 1], [], []>} : vector<64x16xbf16>, vector<16x16xbf16>, vector<64x16xf32> -> vector<64x16xf32>
    %58 = arith.addf %51, %57 : vector<64x16xf32>
    %c2_54 = arith.constant 2 : index
    %c0_55 = arith.constant 0 : index
    %c0_56 = arith.constant 0 : index
    %59 = vector.load %arg12[%c2_54, %c0_55, %c0_56] : memref<10x10x16xf32, #tpu.memory_space<vmem>>, vector<8x8x16xf32>
    %60 = vector.shape_cast %59 : vector<8x8x16xf32> to vector<64x16xf32>
    %61 = arith.truncf %60 : vector<64x16xf32> to vector<64x16xbf16>
    %c6 = arith.constant 6 : index
    %c0_57 = arith.constant 0 : index
    %c0_58 = arith.constant 0 : index
    %62 = vector.load %arg3[%c6, %c0_57, %c0_58] : memref<9x16x16xbf16, #tpu.memory_space<vmem>>, vector<1x16x16xbf16>
    %63 = vector.shape_cast %62 : vector<1x16x16xbf16> to vector<16x16xbf16>
    %cst_59 = arith.constant dense<0.000000e+00> : vector<64x16xf32>
    %64 = tpu.matmul %61, %63, %cst_59 {dimension_numbers = #tpu.dot_dimension_numbers<[1], [0], [0], [1], [0, 0, 1, 1], [], []>} : vector<64x16xbf16>, vector<16x16xbf16>, vector<64x16xf32> -> vector<64x16xf32>
    %65 = arith.addf %58, %64 : vector<64x16xf32>
    %c2_60 = arith.constant 2 : index
    %c1_61 = arith.constant 1 : index
    %c0_62 = arith.constant 0 : index
    %66 = vector.load %arg12[%c2_60, %c1_61, %c0_62] : memref<10x10x16xf32, #tpu.memory_space<vmem>>, vector<8x8x16xf32>
    %67 = vector.shape_cast %66 : vector<8x8x16xf32> to vector<64x16xf32>
    %68 = arith.truncf %67 : vector<64x16xf32> to vector<64x16xbf16>
    %c7 = arith.constant 7 : index
    %c0_63 = arith.constant 0 : index
    %c0_64 = arith.constant 0 : index
    %69 = vector.load %arg3[%c7, %c0_63, %c0_64] : memref<9x16x16xbf16, #tpu.memory_space<vmem>>, vector<1x16x16xbf16>
    %70 = vector.shape_cast %69 : vector<1x16x16xbf16> to vector<16x16xbf16>
    %cst_65 = arith.constant dense<0.000000e+00> : vector<64x16xf32>
    %71 = tpu.matmul %68, %70, %cst_65 {dimension_numbers = #tpu.dot_dimension_numbers<[1], [0], [0], [1], [0, 0, 1, 1], [], []>} : vector<64x16xbf16>, vector<16x16xbf16>, vector<64x16xf32> -> vector<64x16xf32>
    %72 = arith.addf %65, %71 : vector<64x16xf32>
    %c2_66 = arith.constant 2 : index
    %c2_67 = arith.constant 2 : index
    %c0_68 = arith.constant 0 : index
    %73 = vector.load %arg12[%c2_66, %c2_67, %c0_68] : memref<10x10x16xf32, #tpu.memory_space<vmem>>, vector<8x8x16xf32>
    %74 = vector.shape_cast %73 : vector<8x8x16xf32> to vector<64x16xf32>
    %75 = arith.truncf %74 : vector<64x16xf32> to vector<64x16xbf16>
    %c8 = arith.constant 8 : index
    %c0_69 = arith.constant 0 : index
    %c0_70 = arith.constant 0 : index
    %76 = vector.load %arg3[%c8, %c0_69, %c0_70] : memref<9x16x16xbf16, #tpu.memory_space<vmem>>, vector<1x16x16xbf16>
    %77 = vector.shape_cast %76 : vector<1x16x16xbf16> to vector<16x16xbf16>
    %cst_71 = arith.constant dense<0.000000e+00> : vector<64x16xf32>
    %78 = tpu.matmul %75, %77, %cst_71 {dimension_numbers = #tpu.dot_dimension_numbers<[1], [0], [0], [1], [0, 0, 1, 1], [], []>} : vector<64x16xbf16>, vector<16x16xbf16>, vector<64x16xf32> -> vector<64x16xf32>
    %79 = arith.addf %72, %78 : vector<64x16xf32>
    %c0_72 = arith.constant 0 : index
    %c0_73 = arith.constant 0 : index
    %80 = vector.load %arg7[%c0_72, %c0_73] : memref<1x16xf32, #tpu.memory_space<vmem>>, vector<1x16xf32>
    %81 = vector.broadcast %80 : vector<1x16xf32> to vector<64x16xf32>
    %82 = arith.mulf %79, %81 : vector<64x16xf32>
    %c0_74 = arith.constant 0 : index
    %c0_75 = arith.constant 0 : index
    %83 = vector.load %arg8[%c0_74, %c0_75] : memref<1x16xf32, #tpu.memory_space<vmem>>, vector<1x16xf32>
    %84 = vector.broadcast %83 : vector<1x16xf32> to vector<64x16xf32>
    %85 = arith.addf %82, %84 : vector<64x16xf32>
    %cst_76 = arith.constant 0.000000e+00 : f32
    %86 = vector.broadcast %cst_76 : f32 to vector<64x16xf32>
    %87 = arith.maximumf %85, %86 : vector<64x16xf32>
    %88 = arith.truncf %87 : vector<64x16xf32> to vector<64x16xbf16>
    %c0_77 = arith.constant 0 : index
    %c0_78 = arith.constant 0 : index
    %89 = vector.load %arg4[%c0_77, %c0_78] : memref<16x64xbf16, #tpu.memory_space<vmem>>, vector<16x64xbf16>
    %cst_79 = arith.constant dense<0.000000e+00> : vector<64x64xf32>
    %90 = tpu.matmul %88, %89, %cst_79 {dimension_numbers = #tpu.dot_dimension_numbers<[1], [0], [0], [1], [0, 0, 1, 1], [], []>} : vector<64x16xbf16>, vector<16x64xbf16>, vector<64x64xf32> -> vector<64x64xf32>
    %c0_80 = arith.constant 0 : index
    %c0_81 = arith.constant 0 : index
    %91 = vector.load %arg9[%c0_80, %c0_81] : memref<1x64xf32, #tpu.memory_space<vmem>>, vector<1x64xf32>
    %92 = vector.broadcast %91 : vector<1x64xf32> to vector<64x64xf32>
    %93 = arith.mulf %90, %92 : vector<64x64xf32>
    %c0_82 = arith.constant 0 : index
    %c0_83 = arith.constant 0 : index
    %94 = vector.load %arg10[%c0_82, %c0_83] : memref<1x64xf32, #tpu.memory_space<vmem>>, vector<1x64xf32>
    %95 = vector.broadcast %94 : vector<1x64xf32> to vector<64x64xf32>
    %96 = arith.addf %93, %95 : vector<64x64xf32>
    %97 = arith.extf %1 : vector<64x64xbf16> to vector<64x64xf32>
    %98 = arith.addf %96, %97 : vector<64x64xf32>
    %cst_84 = arith.constant 0.000000e+00 : f32
    %99 = vector.broadcast %cst_84 : f32 to vector<64x64xf32>
    %100 = arith.maximumf %98, %99 : vector<64x64xf32>
    %c0_85 = arith.constant 0 : index
    %c0_86 = arith.constant 0 : index
    %c0_87 = arith.constant 0 : index
    %101 = vector.load %arg11[%c0_85, %c0_86, %c0_87] : memref<1x64x64xf32, #tpu.memory_space<vmem>>, vector<1x64x64xf32>
    %102 = vector.shape_cast %101 : vector<1x64x64xf32> to vector<64x64xf32>
    %103 = vector.shape_cast %100 : vector<64x64xf32> to vector<1x64x64xf32>
    tpu.vector_store %arg11[%c0_85, %c0_86, %c0_87], %103 {strides = array<i32>} : memref<1x64x64xf32, #tpu.memory_space<vmem>>, vector<1x64x64xf32>,
    return
  }
  func.func @transform_0(%arg0: i32) -> (i32, i32, i32) {
    %c0_i32 = arith.constant 0 : i32
    %c0_i32_0 = arith.constant 0 : i32
    %c0_i32_1 = arith.constant 0 : i32
    return %arg0, %c0_i32, %c0_i32_0 : i32, i32, i32
  }
  func.func @transform_1(%arg0: i32) -> (i32, i32) {
    %c0_i32 = arith.constant 0 : i32
    %c0_i32_0 = arith.constant 0 : i32
    %c0_i32_1 = arith.constant 0 : i32
    return %c0_i32, %c0_i32_0 : i32, i32
  }
  func.func @transform_2(%arg0: i32) -> (i32, i32, i32) {
    %c0_i32 = arith.constant 0 : i32
    %c0_i32_0 = arith.constant 0 : i32
    %c0_i32_1 = arith.constant 0 : i32
    %c0_i32_2 = arith.constant 0 : i32
    return %c0_i32, %c0_i32_0, %c0_i32_1 : i32, i32, i32
  }
  func.func @transform_3(%arg0: i32) -> (i32, i32) {
    %c0_i32 = arith.constant 0 : i32
    %c0_i32_0 = arith.constant 0 : i32
    %c0_i32_1 = arith.constant 0 : i32
    return %c0_i32, %c0_i32_0 : i32, i32
  }
  func.func @transform_4(%arg0: i32) -> (i32, i32) {
    %c0_i32 = arith.constant 0 : i32
    %c0_i32_0 = arith.constant 0 : i32
    %c0_i32_1 = arith.constant 0 : i32
    return %c0_i32, %c0_i32_0 : i32, i32
  }
  func.func @transform_5(%arg0: i32) -> (i32, i32) {
    %c0_i32 = arith.constant 0 : i32
    %c0_i32_0 = arith.constant 0 : i32
    %c0_i32_1 = arith.constant 0 : i32
    return %c0_i32, %c0_i32_0 : i32, i32
  }
  func.func @transform_6(%arg0: i32) -> (i32, i32) {
    %c0_i32 = arith.constant 0 : i32
    %c0_i32_0 = arith.constant 0 : i32
    %c0_i32_1 = arith.constant 0 : i32
    return %c0_i32, %c0_i32_0 : i32, i32
  }
  func.func @transform_7(%arg0: i32) -> (i32, i32) {
    %c0_i32 = arith.constant 0 : i32
    %c0_i32_0 = arith.constant 0 : i32
    %c0_i32_1 = arith.constant 0 : i32
    return %c0_i32, %c0_i32_0 : i32, i32
  }
  func.func @transform_8(%arg0: i32) -> (i32, i32) {
    %c0_i32 = arith.constant 0 : i32
    %c0_i32_0 = arith.constant 0 : i32
    %c0_i32_1 = arith.constant 0 : i32
    return %c0_i32, %c0_i32_0 : i32, i32
  }
  func.func @transform_9(%arg0: i32) -> (i32, i32) {
    %c0_i32 = arith.constant 0 : i32
    %c0_i32_0 = arith.constant 0 : i32
    %c0_i32_1 = arith.constant 0 : i32
    return %c0_i32, %c0_i32_0 : i32, i32
  }
  func.func @transform_10(%arg0: i32) -> (i32, i32, i32) {
    %c0_i32 = arith.constant 0 : i32
    %c0_i32_0 = arith.constant 0 : i32
    %c0_i32_1 = arith.constant 0 : i32
    return %arg0, %c0_i32, %c0_i32_0 : i32, i32, i32
  }
}

</mosaic_0001>

<llo_original>
// kernel: tpu_custom_call.1
$region0: #{tpu_custom_call.1}
  #allocation0 [shape = 'u32[]', space=smem, size = 0x4, offset = 0x4, fixed_abs, tag = 'smem constant byte address 0x4 - core index']
  #allocation1 [shape = 'u32[144,128]{1,0:T(1,128)}', space=vmem, size = 0x12000, scoped, tag = 'internal scratch']
  #allocation2 [shape = 'f32[10,10,16]{2,1,0:T(8,128)}', space=vmem, size = 0x14000, scoped, tag = 'scratch operand']
  %s0 = inlined_call_operand.hbm [shape: bf16[2,64,64], index: 0, kind: input, shape index: {}]
  %s1 = inlined_call_operand.vmem [shape: bf16[64,16], index: 1, kind: input, shape index: {}]
  %s2 = inlined_call_operand.hbm [shape: bf16[9,16,16], index: 2, kind: input, shape index: {}]
  %s3 = inlined_call_operand.vmem [shape: bf16[16,64], index: 3, kind: input, shape index: {}]
  %s4 = inlined_call_operand.vmem [shape: f32[1,16], index: 4, kind: input, shape index: {}]
  %s5 = inlined_call_operand.vmem [shape: f32[1,16], index: 5, kind: input, shape index: {}]
  %s6 = inlined_call_operand.vmem [shape: f32[1,16], index: 6, kind: input, shape index: {}]
  %s7 = inlined_call_operand.vmem [shape: f32[1,16], index: 7, kind: input, shape index: {}]
  %s8 = inlined_call_operand.vmem [shape: f32[1,64], index: 8, kind: input, shape index: {}]
  %s9 = inlined_call_operand.vmem [shape: f32[1,64], index: 9, kind: input, shape index: {}]
  %s10 = inlined_call_operand.hbm [shape: f32[2,64,64], index: 10, kind: output, shape index: {}]
  %s11 = sld [smem:[#allocation0]]
  $region81: #{tpu_custom_call.1} parent=0
    _
  %s13 = ssub.s32 1, %s11
  %s14 = scalar_select 0, %s13, %s11
  $region1: #{tpu_custom_call.1} parent=0
    #allocation3 [shape = 'u8[32768]{0}', space=vmem, size = 0x8000, scoped, tag = 'input window, operand 0']
    #allocation4 [shape = 's32[2]{0}', space=sflag, size = 0x8, scoped, tag = 'scoped memory for tpu_custom_call.1']
    #allocation5 [shape = 's32[2]{0}', space=sflag, size = 0x8, scoped, tag = 'scoped memory for tpu_custom_call.1']
    #allocation6 [shape = 'u8[36864]{0}', space=vmem, size = 0x9000, scoped, tag = 'input window, operand 2, single buffered']
    #allocation7 [shape = 's32[1]{0}', space=sflag, size = 0x4, scoped, tag = 'scoped memory for tpu_custom_call.1']
    #allocation8 [shape = 'u8[65536]{0}', space=vmem, size = 0x10000, scoped, tag = 'output window, operand 0']
    %15 = vsyncpa [#allocation4], 0
    %s16 = scalar_lea.sflag [#allocation4], 1
    %17 = vsyncpa %s16, 0
    %18 = vsyncpa [#allocation7], 0
    %19 = vsyncpa [#allocation5], 0
    %s20 = scalar_lea.sflag [#allocation5], 1
    %21 = vsyncpa %s20, 0
    loop: start=0, step=1, limit=4
    $region2: #{tpu_custom_call.1} parent=1 // loop_pre_header
      _
    $region3: #{tpu_custom_call.1} parent=1 // loop_header
      %s23 = sphi 0, %s27
      %p24 = scmp.ge.s32.totalorder %s23, 4
      %s33 = sphi 0, %s35
      %s36 = sphi 0, %s33
      %s37 = sphi 0, %s36
      %s53 = sphi 0, %s37
      %s57 = sphi 0, %s57
      %s59 = sphi 0, %s57
      %s60 = sphi 0, %s59
      %s74 = sphi 0, %s60
      %s78 = sphi 0, %s78
      %s80 = sphi 0, %s78
      %s81 = sphi 0, %s80
      %s95 = sphi 0, %s81
      %s99 = sphi 0, %s99
      %s101 = sphi 0, %s99
      %s102 = sphi 0, %s101
      %s116 = sphi 0, %s102
      %s120 = sphi 0, %s120
      %s122 = sphi 0, %s120
      %s123 = sphi 0, %s122
      %s137 = sphi 0, %s123
      %s141 = sphi 0, %s141
      %s143 = sphi 0, %s141
      %s144 = sphi 0, %s143
      %s158 = sphi 0, %s144
      %s162 = sphi 0, %s162
      %s164 = sphi 0, %s162
      %s165 = sphi 0, %s164
      %s179 = sphi 0, %s165
      %s183 = sphi 0, %s183
      %s185 = sphi 0, %s183
      %s186 = sphi 0, %s185
      %s200 = sphi 0, %s186
      %s204 = sphi 0, %s204
      %s206 = sphi 0, %s204
      %s207 = sphi 0, %s206
      %s221 = sphi 0, %s207
      %s225 = sphi 0, %s225
      %s227 = sphi 0, %s225
      %s228 = sphi 0, %s227
      %s242 = sphi 0, %s228
      %s248 = sphi 0, %s250
      %s251 = sphi 0, %s248
      %s252 = sphi 0, %s251
      %s268 = sphi 0, %s252
    $region4: #{tpu_custom_call.1} parent=1 // loop_header_branch
      %26 = sbr.rel (%p24) target = $region8
    $region5: #{tpu_custom_call.1} parent=1 // loop_body
      %s28 = ssub.s32 %s23, 1
      %s29 = ssub.s32 %s23, 2
      %s30 = sadd.s32 %s23, 1
      %s31 = ssub.s32 %s23, %s30
      %p32 = scmp.eq.s32.totalorder %s31, 0
      %s34 = sadd.s32 %s33, 1
      %s35 = scalar_select %p32, %s33, %s34
      %p38 = pneg %p32
      %p39 = scmp.eq.s32.totalorder %s23, 1
      %p40 = por %p38, %p39
      %p41 = scmp.ne.s32.totalorder %s33, %s36
      %p42 = scmp.eq.s32.totalorder %s23, 0
      %p43 = por %p41, %p42
      %p44 = scmp.ne.s32.totalorder %s33, %s36
      %p45 = scmp.eq.s32.totalorder %s28, 1
      %p46 = por %p44, %p45
      %p47 = scmp.ne.s32.totalorder %s36, %s37
      %p48 = scmp.eq.s32.totalorder %s28, 0
      %p49 = por %p47, %p48
      %p50 = scmp.ne.s32.totalorder %s36, %s37
      %p51 = scmp.eq.s32.totalorder %s29, 1
      %p52 = por %p50, %p51
      %p54 = scmp.ne.s32.totalorder %s37, %s53
      %p55 = scmp.eq.s32.totalorder %s29, 0
      %p56 = por %p54, %p55
      %s58 = sadd.s32 %s57, 1
      %p61 = scmp.eq.s32.totalorder %s23, 1
      %p62 = scmp.ne.s32.totalorder %s57, %s59
      %p63 = scmp.eq.s32.totalorder %s23, 0
      %p64 = por %p62, %p63
      %p65 = scmp.ne.s32.totalorder %s57, %s59
      %p66 = scmp.eq.s32.totalorder %s28, 1
      %p67 = por %p65, %p66
      %p68 = scmp.ne.s32.totalorder %s59, %s60
      %p69 = scmp.eq.s32.totalorder %s28, 0
      %p70 = por %p68, %p69
      %p71 = scmp.ne.s32.totalorder %s59, %s60
      %p72 = scmp.eq.s32.totalorder %s29, 1
      %p73 = por %p71, %p72
      %p75 = scmp.ne.s32.totalorder %s60, %s74
      %p76 = scmp.eq.s32.totalorder %s29, 0
      %p77 = por %p75, %p76
      %s79 = sadd.s32 %s78, 1
      %p82 = scmp.eq.s32.totalorder %s23, 1
      %p83 = scmp.ne.s32.totalorder %s78, %s80
      %p84 = scmp.eq.s32.totalorder %s23, 0
      %p85 = por %p83, %p84
      %p86 = scmp.ne.s32.totalorder %s78, %s80
      %p87 = scmp.eq.s32.totalorder %s28, 1
      %p88 = por %p86, %p87
      %p89 = scmp.ne.s32.totalorder %s80, %s81
      %p90 = scmp.eq.s32.totalorder %s28, 0
      %p91 = por %p89, %p90
      %p92 = scmp.ne.s32.totalorder %s80, %s81
      %p93 = scmp.eq.s32.totalorder %s29, 1
      %p94 = por %p92, %p93
      %p96 = scmp.ne.s32.totalorder %s81, %s95
      %p97 = scmp.eq.s32.totalorder %s29, 0
      %p98 = por %p96, %p97
      %s100 = sadd.s32 %s99, 1
      %p103 = scmp.eq.s32.totalorder %s23, 1
      %p104 = scmp.ne.s32.totalorder %s99, %s101
      %p105 = scmp.eq.s32.totalorder %s23, 0
      %p106 = por %p104, %p105
      %p107 = scmp.ne.s32.totalorder %s99, %s101
      %p108 = scmp.eq.s32.totalorder %s28, 1
      %p109 = por %p107, %p108
      %p110 = scmp.ne.s32.totalorder %s101, %s102
      %p111 = scmp.eq.s32.totalorder %s28, 0
      %p112 = por %p110, %p111
      %p113 = scmp.ne.s32.totalorder %s101, %s102
      %p114 = scmp.eq.s32.totalorder %s29, 1
      %p115 = por %p113, %p114
      %p117 = scmp.ne.s32.totalorder %s102, %s116
      %p118 = scmp.eq.s32.totalorder %s29, 0
      %p119 = por %p117, %p118
      %s121 = sadd.s32 %s120, 1
      %p124 = scmp.eq.s32.totalorder %s23, 1
      %p125 = scmp.ne.s32.totalorder %s120, %s122
      %p126 = scmp.eq.s32.totalorder %s23, 0
      %p127 = por %p125, %p126
      %p128 = scmp.ne.s32.totalorder %s120, %s122
      %p129 = scmp.eq.s32.totalorder %s28, 1
      %p130 = por %p128, %p129
      %p131 = scmp.ne.s32.totalorder %s122, %s123
      %p132 = scmp.eq.s32.totalorder %s28, 0
      %p133 = por %p131, %p132
      %p134 = scmp.ne.s32.totalorder %s122, %s123
      %p135 = scmp.eq.s32.totalorder %s29, 1
      %p136 = por %p134, %p135
      %p138 = scmp.ne.s32.totalorder %s123, %s137
      %p139 = scmp.eq.s32.totalorder %s29, 0
      %p140 = por %p138, %p139
      %s142 = sadd.s32 %s141, 1
      %p145 = scmp.eq.s32.totalorder %s23, 1
      %p146 = scmp.ne.s32.totalorder %s141, %s143
      %p147 = scmp.eq.s32.totalorder %s23, 0
      %p148 = por %p146, %p147
      %p149 = scmp.ne.s32.totalorder %s141, %s143
      %p150 = scmp.eq.s32.totalorder %s28, 1
      %p151 = por %p149, %p150
      %p152 = scmp.ne.s32.totalorder %s143, %s144
      %p153 = scmp.eq.s32.totalorder %s28, 0
      %p154 = por %p152, %p153
      %p155 = scmp.ne.s32.totalorder %s143, %s144
      %p156 = scmp.eq.s32.totalorder %s29, 1
      %p157 = por %p155, %p156
      %p159 = scmp.ne.s32.totalorder %s144, %s158
      %p160 = scmp.eq.s32.totalorder %s29, 0
      %p161 = por %p159, %p160
      %s163 = sadd.s32 %s162, 1
      %p166 = scmp.eq.s32.totalorder %s23, 1
      %p167 = scmp.ne.s32.totalorder %s162, %s164
      %p168 = scmp.eq.s32.totalorder %s23, 0
      %p169 = por %p167, %p168
      %p170 = scmp.ne.s32.totalorder %s162, %s164
      %p171 = scmp.eq.s32.totalorder %s28, 1
      %p172 = por %p170, %p171
      %p173 = scmp.ne.s32.totalorder %s164, %s165
      %p174 = scmp.eq.s32.totalorder %s28, 0
      %p175 = por %p173, %p174
      %p176 = scmp.ne.s32.totalorder %s164, %s165
      %p177 = scmp.eq.s32.totalorder %s29, 1
      %p178 = por %p176, %p177
      %p180 = scmp.ne.s32.totalorder %s165, %s179
      %p181 = scmp.eq.s32.totalorder %s29, 0
      %p182 = por %p180, %p181
      %s184 = sadd.s32 %s183, 1
      %p187 = scmp.eq.s32.totalorder %s23, 1
      %p188 = scmp.ne.s32.totalorder %s183, %s185
      %p189 = scmp.eq.s32.totalorder %s23, 0
      %p190 = por %p188, %p189
      %p191 = scmp.ne.s32.totalorder %s183, %s185
      %p192 = scmp.eq.s32.totalorder %s28, 1
      %p193 = por %p191, %p192
      %p194 = scmp.ne.s32.totalorder %s185, %s186
      %p195 = scmp.eq.s32.totalorder %s28, 0
      %p196 = por %p194, %p195
      %p197 = scmp.ne.s32.totalorder %s185, %s186
      %p198 = scmp.eq.s32.totalorder %s29, 1
      %p199 = por %p197, %p198
      %p201 = scmp.ne.s32.totalorder %s186, %s200
      %p202 = scmp.eq.s32.totalorder %s29, 0
      %p203 = por %p201, %p202
      %s205 = sadd.s32 %s204, 1
      %p208 = scmp.eq.s32.totalorder %s23, 1
      %p209 = scmp.ne.s32.totalorder %s204, %s206
      %p210 = scmp.eq.s32.totalorder %s23, 0
      %p211 = por %p209, %p210
      %p212 = scmp.ne.s32.totalorder %s204, %s206
      %p213 = scmp.eq.s32.totalorder %s28, 1
      %p214 = por %p212, %p213
      %p215 = scmp.ne.s32.totalorder %s206, %s207
      %p216 = scmp.eq.s32.totalorder %s28, 0
      %p217 = por %p215, %p216
      %p218 = scmp.ne.s32.totalorder %s206, %s207
      %p219 = scmp.eq.s32.totalorder %s29, 1
      %p220 = por %p218, %p219
      %p222 = scmp.ne.s32.totalorder %s207, %s221
      %p223 = scmp.eq.s32.totalorder %s29, 0
      %p224 = por %p222, %p223
      %s226 = sadd.s32 %s225, 1
      %p229 = scmp.eq.s32.totalorder %s23, 1
      %p230 = scmp.ne.s32.totalorder %s225, %s227
      %p231 = scmp.eq.s32.totalorder %s23, 0
      %p232 = por %p230, %p231
      %p233 = scmp.ne.s32.totalorder %s225, %s227
      %p234 = scmp.eq.s32.totalorder %s28, 1
      %p235 = por %p233, %p234
      %p236 = scmp.ne.s32.totalorder %s227, %s228
      %p237 = scmp.eq.s32.totalorder %s28, 0
      %p238 = por %p236, %p237
      %p239 = scmp.ne.s32.totalorder %s227, %s228
      %p240 = scmp.eq.s32.totalorder %s29, 1
      %p241 = por %p239, %p240
      %p243 = scmp.ne.s32.totalorder %s228, %s242
      %p244 = scmp.eq.s32.totalorder %s29, 0
      %p245 = por %p243, %p244
      %s246 = ssub.s32 %s23, %s30
      %p247 = scmp.eq.s32.totalorder %s246, 0
      %s249 = sadd.s32 %s248, 1
      %s250 = scalar_select %p247, %s248, %s249
      %p253 = pneg %p247
      %p254 = scmp.eq.s32.totalorder %s23, 1
      %p255 = por %p253, %p254
      %p256 = scmp.ne.s32.totalorder %s248, %s251
      %p257 = scmp.eq.s32.totalorder %s23, 0
      %p258 = por %p256, %p257
      %p259 = scmp.ne.s32.totalorder %s248, %s251
      %p260 = scmp.eq.s32.totalorder %s28, 1
      %p261 = por %p259, %p260
      %p262 = scmp.ne.s32.totalorder %s251, %s252
      %p263 = scmp.eq.s32.totalorder %s28, 0
      %p264 = por %p262, %p263
      %p265 = scmp.ne.s32.totalorder %s251, %s252
      %p266 = scmp.eq.s32.totalorder %s29, 1
      %p267 = por %p265, %p266
      %p269 = scmp.ne.s32.totalorder %s252, %s268
      %p270 = scmp.eq.s32.totalorder %s29, 0
      %p271 = por %p269, %p270
      %p272 = scmp.le.s32.totalorder 1, %s23
      %p273 = scmp.lt.s32.totalorder %s23, 3
      %p274 = pnand %p272, %p273
      %p275 = pneg %p274
      // Predicated region
      $region9: #{tpu_custom_call.1} parent=5 // pred_check
        _
      $region10: #{tpu_custom_call.1} parent=5 // pred_check_branch
        %277 = sbr.rel (%p274) target = $region12
      $region11: #{tpu_custom_call.1} parent=5 // pred_region
        %s278 = ssub.s32 %s23, 1
        // Predicated region
        $region13: #{tpu_custom_call.1} parent=11 // pred_check
          %p279 = pneg %p70
        $region14: #{tpu_custom_call.1} parent=11 // pred_check_branch
          %281 = sbr.rel (%p279) target = $region16
        $region15: #{tpu_custom_call.1} parent=11 // pred_region
          _
        $region16: #{tpu_custom_call.1} parent=11 // pred_fallthru
          _
        // Predicated region
        $region17: #{tpu_custom_call.1} parent=11 // pred_check
          %p282 = pneg %p91
        $region18: #{tpu_custom_call.1} parent=11 // pred_check_branch
          %284 = sbr.rel (%p282) target = $region20
        $region19: #{tpu_custom_call.1} parent=11 // pred_region
          %s286 = ssub.s32 1152, 1152
          %287 = vsyncadd [#allocation7], %s286
          %s288 = sshll.u32 [#allocation6], 4
          %s289 = int_to_ptr.vmem [resolvable:$true] %s288
          %294 = dma.hbm_to_vmem [thread:$0]  %s2, 1152, %s289, [#allocation7], 64, 64, 4
        $region20: #{tpu_custom_call.1} parent=11 // pred_fallthru
          _
        // Predicated region
        $region21: #{tpu_custom_call.1} parent=11 // pred_check
          %p295 = pneg %p112
        $region22: #{tpu_custom_call.1} parent=11 // pred_check_branch
          %297 = sbr.rel (%p295) target = $region24
        $region23: #{tpu_custom_call.1} parent=11 // pred_region
          _
        $region24: #{tpu_custom_call.1} parent=11 // pred_fallthru
          _
        // Predicated region
        $region25: #{tpu_custom_call.1} parent=11 // pred_check
          %p298 = pneg %p133
        $region26: #{tpu_custom_call.1} parent=11 // pred_check_branch
          %300 = sbr.rel (%p298) target = $region28
        $region27: #{tpu_custom_call.1} parent=11 // pred_region
          _
        $region28: #{tpu_custom_call.1} parent=11 // pred_fallthru
          _
        // Predicated region
        $region29: #{tpu_custom_call.1} parent=11 // pred_check
          %p301 = pneg %p154
        $region30: #{tpu_custom_call.1} parent=11 // pred_check_branch
          %303 = sbr.rel (%p301) target = $region32
        $region31: #{tpu_custom_call.1} parent=11 // pred_region
          _
        $region32: #{tpu_custom_call.1} parent=11 // pred_fallthru
          _
        // Predicated region
        $region33: #{tpu_custom_call.1} parent=11 // pred_check
          %p304 = pneg %p175
        $region34: #{tpu_custom_call.1} parent=11 // pred_check_branch
          %306 = sbr.rel (%p304) target = $region36
        $region35: #{tpu_custom_call.1} parent=11 // pred_region
          _
        $region36: #{tpu_custom_call.1} parent=11 // pred_fallthru
          _
        // Predicated region
        $region37: #{tpu_custom_call.1} parent=11 // pred_check
          %p307 = pneg %p196
        $region38: #{tpu_custom_call.1} parent=11 // pred_check_branch
          %309 = sbr.rel (%p307) target = $region40
        $region39: #{tpu_custom_call.1} parent=11 // pred_region
          _
        $region40: #{tpu_custom_call.1} parent=11 // pred_fallthru
          _
        // Predicated region
        $region41: #{tpu_custom_call.1} parent=11 // pred_check
          %p310 = pneg %p217
        $region42: #{tpu_custom_call.1} parent=11 // pred_check_branch
          %312 = sbr.rel (%p310) target = $region44
        $region43: #{tpu_custom_call.1} parent=11 // pred_region
          _
        $region44: #{tpu_custom_call.1} parent=11 // pred_fallthru
          _
        // Predicated region
        $region45: #{tpu_custom_call.1} parent=11 // pred_check
          %p313 = pneg %p238
        $region46: #{tpu_custom_call.1} parent=11 // pred_check_branch
          %315 = sbr.rel (%p313) target = $region48
        $region47: #{tpu_custom_call.1} parent=11 // pred_region
          _
        $region48: #{tpu_custom_call.1} parent=11 // pred_fallthru
          _
      $region12: #{tpu_custom_call.1} parent=5 // pred_fallthru
        _
      %p316 = scmp.lt.s32.totalorder %s23, 2
      // Predicated region
      $region49: #{tpu_custom_call.1} parent=5 // pred_check
        %p317 = pneg %p316
      $region50: #{tpu_custom_call.1} parent=5 // pred_check_branch
        %319 = sbr.rel (%p317) target = $region52
      $region51: #{tpu_custom_call.1} parent=5 // pred_region
        // Predicated region
        $region53: #{tpu_custom_call.1} parent=51 // pred_check
          %p320 = pneg %p43
        $region54: #{tpu_custom_call.1} parent=51 // pred_check_branch
          %322 = sbr.rel (%p320) target = $region56
        $region55: #{tpu_custom_call.1} parent=51 // pred_region
          %s323 = sand.u32 %s33, 1
          %s324 = scalar_lea.sflag [#allocation4], %s323
          %s325 = sand.u32 %s33, 1
          %s326 = smul.addr %s325, 32
          %s327 = scalar_lea.vmem [#allocation3], %s326
          %s329 = ssub.s32 512, 512
          %330 = vsyncadd %s324, %s329
          %s331 = smul.addr %s23, 8
          %s332 = smul.addr %s331, 64
          %s333 = scalar_lea.hbm %s0, %s332
          %s334 = sshll.u32 %s327, 4
          %s335 = int_to_ptr.vmem [resolvable:$true] %s334
          %340 = dma.hbm_to_vmem [thread:$0]  %s333, 512, %s335, %s324, 64, 64, 4
        $region56: #{tpu_custom_call.1} parent=51 // pred_fallthru
          _
      $region52: #{tpu_custom_call.1} parent=5 // pred_fallthru
        _
      %p341 = scmp.le.s32.totalorder 1, %s23
      %p342 = scmp.lt.s32.totalorder %s23, 3
      %p343 = pnand %p341, %p342
      %p344 = pneg %p343
      // Predicated region
      $region57: #{tpu_custom_call.1} parent=5 // pred_check
        _
      $region58: #{tpu_custom_call.1} parent=5 // pred_check_branch
        %346 = sbr.rel (%p343) target = $region60
      $region59: #{tpu_custom_call.1} parent=5 // pred_region
        %s347 = ssub.s32 %s23, 1
        %s348 = sand.u32 %s36, 1
        %s349 = scalar_lea.sflag [#allocation4], %s348
        %s350 = sand.u32 %s36, 1
        %s351 = smul.addr %s350, 32
        %s352 = scalar_lea.vmem [#allocation3], %s351
        // Predicated region
        $region61: #{tpu_custom_call.1} parent=59 // pred_check
          %p353 = pneg %p49
        $region62: #{tpu_custom_call.1} parent=59 // pred_check_branch
          %355 = sbr.rel (%p353) target = $region64
        $region63: #{tpu_custom_call.1} parent=59 // pred_region
          %356 = dma.done %s349, 512
        $region64: #{tpu_custom_call.1} parent=59 // pred_fallthru
          _
        // Predicated region
        $region65: #{tpu_custom_call.1} parent=59 // pred_check
          %p357 = pneg %p91
        $region66: #{tpu_custom_call.1} parent=59 // pred_check_branch
          %359 = sbr.rel (%p357) target = $region68
        $region67: #{tpu_custom_call.1} parent=59 // pred_region
          %360 = dma.done [#allocation7], 1152
        $region68: #{tpu_custom_call.1} parent=59 // pred_fallthru
          _
        %s361 = sand.u32 %s36, 1
        %s362 = scalar_lea.sflag [#allocation4], %s361
        %s363 = sand.u32 %s36, 1
        %s364 = smul.addr %s363, 32
        %s365 = scalar_lea.vmem [#allocation3], %s364
        %p366 = pneg %p49
        %p367 = pneg %p46
        %p368 = pneg %p70
        %p369 = pneg %p67
        %p370 = pneg %p91
        %p371 = pneg %p88
        %p372 = pneg %p112
        %p373 = pneg %p109
        %p374 = pneg %p133
        %p375 = pneg %p130
        %p376 = pneg %p154
        %p377 = pneg %p151
        %p378 = pneg %p175
        %p379 = pneg %p172
        %p380 = pneg %p196
        %p381 = pneg %p193
        %p382 = pneg %p217
        %p383 = pneg %p214
        %p384 = pneg %p238
        %p385 = pneg %p235
        %p386 = pneg %p264
        %p387 = pneg %p261
        %s388 = sand.u32 %s251, 1
        %s389 = scalar_lea.sflag [#allocation5], %s388
        %s390 = sand.u32 %s251, 1
        %s391 = smul.addr %s390, 64
        %s392 = scalar_lea.vmem [#allocation8], %s391
        %v394 = vld [vmem:[%s352] sm:$0xf]
        %v395 = vld [vmem:[%s352 + $0x4] sm:$0xf]
        %v396 = vld [vmem:[%s352 + $0x8] sm:$0xf]
        %v397 = vld [vmem:[%s352 + $0xc] sm:$0xf]
        %v398 = vld [vmem:[%s352 + $0x10] sm:$0xf]
        %v399 = vld [vmem:[%s352 + $0x14] sm:$0xf]
        %v400 = vld [vmem:[%s352 + $0x18] sm:$0xf]
        %v401 = vld [vmem:[%s352 + $0x1c] sm:$0xf]
        %v402 = vld [vmem:[%s1] sm:$0xf]
        %v403 = vld [vmem:[%s1 + $0x4] sm:$0xf]
        %v404 = vld [vmem:[%s1 + $0x8] sm:$0xf]
        %v405 = vld [vmem:[%s1 + $0xc] sm:$0xf]
        %v406 = vld [vmem:[%s1 + $0x10] sm:$0xf]
        %v407 = vld [vmem:[%s1 + $0x14] sm:$0xf]
        %v408 = vld [vmem:[%s1 + $0x18] sm:$0xf]
        %v409 = vld [vmem:[%s1 + $0x1c] sm:$0xf]
        %v418 = vunpack.c.l.b16 %v394
        %v419 = vunpack.c.l.b16 %v395
        %v420 = vunpack.c.l.b16 %v396
        %v421 = vunpack.c.l.b16 %v397
        %v422 = vunpack.c.l.b16 %v398
        %v423 = vunpack.c.l.b16 %v399
        %v424 = vunpack.c.l.b16 %v400
        %v425 = vunpack.c.l.b16 %v401
        %v426 = vpack.c.b16 %v419, %v418
        %v427 = vpack.c.b16 %v421, %v420
        %v428 = vpack.c.b16 %v423, %v422
        %v429 = vpack.c.b16 %v425, %v424
        %v438 = vunpack.c.l.b16 %v402
        %v439 = vunpack.c.l.b16 %v403
        %v440 = vunpack.c.l.b16 %v404
        %v441 = vunpack.c.l.b16 %v405
        %v442 = vunpack.c.l.b16 %v406
        %v443 = vunpack.c.l.b16 %v407
        %v444 = vunpack.c.l.b16 %v408
        %v445 = vunpack.c.l.b16 %v409
        %v446 = vpack.c.b16 %v439, %v438
        %v447 = vpack.c.b16 %v441, %v440
        %v448 = vpack.c.b16 %v443, %v442
        %v449 = vpack.c.b16 %v445, %v444
        %vm454 = vcmask 523264
        %v456 = vsel %vm454, %v426, 0
        %v459 = vsel %vm454, %v427, 0
        %v462 = vsel %vm454, %v428, 0
        %v465 = vsel %vm454, %v429, 0
        %467 = vmatprep.subr.bf16.mxu0 0
        %468 = vmatpush1.bf16.msra.mxu0 %v446
        %469 = vmatprep.subr.bf16.mxu0 0
        %470 = vmatpush1.bf16.msra.mxu0 %v447
        %471 = vmatprep.subr.bf16.mxu0 0
        %472 = vmatpush1.bf16.msra.mxu0 %v448
        %473 = vmatprep.subr.bf16.mxu0 0
        %474 = vmatpush1.bf16.msra.mxu0 %v449
        %475 = vmatprep.subr.bf16.mxu0 0
        %476 = vmatpush1.bf16.msra.mxu0 0
        %477 = vmatprep.subr.bf16.mxu0 0
        %478 = vmatpush1.bf16.msra.mxu0 0
        %479 = vmatprep.subr.bf16.mxu0 0
        %480 = vmatpush1.bf16.msra.mxu0 0
        %481 = vmatprep.subr.bf16.mxu0 0
        %482 = vmatpush1.bf16.msra.mxu0 0
        %483 = vmatprep.subr.bf16.mxu0 0
        %484 = vmatpush1.bf16.msra.mxu0 0
        %485 = vmatprep.subr.bf16.mxu0 0
        %486 = vmatpush1.bf16.msra.mxu0 0
        %487 = vmatprep.subr.bf16.mxu0 0
        %488 = vmatpush1.bf16.msra.mxu0 0
        %489 = vmatprep.subr.bf16.mxu0 0
        %490 = vmatpush1.bf16.msra.mxu0 0
        %491 = vmatprep.subr.bf16.mxu0 0
        %492 = vmatpush1.bf16.msra.mxu0 0
        %493 = vmatprep.subr.bf16.mxu0 0
        %494 = vmatpush1.bf16.msra.mxu0 0
        %495 = vmatprep.subr.bf16.mxu0 0
        %496 = vmatpush1.bf16.msra.mxu0 0
        %497 = vmatprep.subr.bf16.mxu0 0
        %498 = vmatpush1.bf16.msra.mxu0 0
        %499 = vmatprep.mubr.bf16.mxu0 0
        %500 = vmatmul.mubr.bf16.gmra.mrb[0].mxu0 %v456
        %v501 = vpop.f32.mrb[0].mxu0
        %v502 = vadd.f32 0.0, %v501
        %v503 = vpop.f32.mrb[0].mxu0
        %v504 = vpop.f32.mrb[0].mxu0
        %v505 = vadd.f32 0.0, %v504
        %v506 = vpop.f32.mrb[0].mxu0
        %507 = vmatprep.mubr.bf16.mxu0 0
        %508 = vmatmul.mubr.bf16.gmra.mrb[0].mxu0 %v459
        %v509 = vpop.f32.mrb[0].mxu0
        %v510 = vadd.f32 0.0, %v509
        %v511 = vpop.f32.mrb[0].mxu0
        %v512 = vpop.f32.mrb[0].mxu0
        %v513 = vadd.f32 0.0, %v512
        %v514 = vpop.f32.mrb[0].mxu0
        %515 = vmatprep.mubr.bf16.mxu0 0
        %516 = vmatmul.mubr.bf16.gmra.mrb[0].mxu0 %v462
        %v517 = vpop.f32.mrb[0].mxu0
        %v518 = vadd.f32 0.0, %v517
        %v519 = vpop.f32.mrb[0].mxu0
        %v520 = vpop.f32.mrb[0].mxu0
        %v521 = vadd.f32 0.0, %v520
        %v522 = vpop.f32.mrb[0].mxu0
        %523 = vmatprep.mubr.bf16.mxu0 0
        %524 = vmatmul.mubr.bf16.gmra.mrb[0].mxu0 %v465
        %v525 = vpop.f32.mrb[0].mxu0
        %v526 = vadd.f32 0.0, %v525
        %v527 = vpop.f32.mrb[0].mxu0
        %v528 = vpop.f32.mrb[0].mxu0
        %v529 = vadd.f32 0.0, %v528
        %v530 = vpop.f32.mrb[0].mxu0
        %531 = vdwg.mxu0
        %v532 = vld [vmem:[%s4] sm:$0x1]
        %v534 = vlaneseq
        %v535 = vshrl.u32 %v534, 7
        %v536 = vsub.s32 0, %v535
        %v537 = vrot.slane %v532, %v536
        %v539 = vmul.f32 %v502, %v537
        %v540 = vmul.f32 %v505, %v537
        %v541 = vmul.f32 %v510, %v537
        %v542 = vmul.f32 %v513, %v537
        %v543 = vmul.f32 %v518, %v537
        %v544 = vmul.f32 %v521, %v537
        %v545 = vmul.f32 %v526, %v537
        %v546 = vmul.f32 %v529, %v537
        %v547 = vld [vmem:[%s5] sm:$0x1]
        %v549 = vlaneseq
        %v550 = vshrl.u32 %v549, 7
        %v551 = vsub.s32 0, %v550
        %v552 = vrot.slane %v547, %v551
        %v554 = vadd.f32 %v539, %v552
        %v555 = vadd.f32 %v540, %v552
        %v556 = vadd.f32 %v541, %v552
        %v557 = vadd.f32 %v542, %v552
        %v558 = vadd.f32 %v543, %v552
        %v559 = vadd.f32 %v544, %v552
        %v560 = vadd.f32 %v545, %v552
        %v561 = vadd.f32 %v546, %v552
        %v562 = vmax.f32 %v554, 0.0
        %v563 = vmax.f32 %v555, 0.0
        %v564 = vmax.f32 %v556, 0.0
        %v565 = vmax.f32 %v557, 0.0
        %v566 = vmax.f32 %v558, 0.0
        %v567 = vmax.f32 %v559, 0.0
        %v568 = vmax.f32 %v560, 0.0
        %v569 = vmax.f32 %v561, 0.0
        %vm570 = vcmask 130048
        %571 = vst.msk [vmem:[#allocation2] sm:$0xff] %vm570, 0.0
        %vm572 = vcmask 123904
        %573 = vst.msk [vmem:[#allocation2 + $0x8] sm:$0x3] %vm572, 0.0
        %574 = vst.msk [vmem:[#allocation2 + $0x10] sm:$0xff] %vm570, 0.0
        %575 = vst.msk [vmem:[#allocation2 + $0x18] sm:$0x3] %vm572, 0.0
        %576 = vst.msk [vmem:[#allocation2 + $0x20] sm:$0xff] %vm570, 0.0
        %577 = vst.msk [vmem:[#allocation2 + $0x28] sm:$0x3] %vm572, 0.0
        %578 = vst.msk [vmem:[#allocation2 + $0x30] sm:$0xff] %vm570, 0.0
        %579 = vst.msk [vmem:[#allocation2 + $0x38] sm:$0x3] %vm572, 0.0
        %580 = vst.msk [vmem:[#allocation2 + $0x40] sm:$0xff] %vm570, 0.0
        %581 = vst.msk [vmem:[#allocation2 + $0x48] sm:$0x3] %vm572, 0.0
        %582 = vst.msk [vmem:[#allocation2 + $0x50] sm:$0xff] %vm570, 0.0
        %583 = vst.msk [vmem:[#allocation2 + $0x58] sm:$0x3] %vm572, 0.0
        %584 = vst.msk [vmem:[#allocation2 + $0x60] sm:$0xff] %vm570, 0.0
        %585 = vst.msk [vmem:[#allocation2 + $0x68] sm:$0x3] %vm572, 0.0
        %586 = vst.msk [vmem:[#allocation2 + $0x70] sm:$0xff] %vm570, 0.0
        %587 = vst.msk [vmem:[#allocation2 + $0x78] sm:$0x3] %vm572, 0.0
        %588 = vst.msk [vmem:[#allocation2 + $0x80] sm:$0xff] %vm570, 0.0
        %589 = vst.msk [vmem:[#allocation2 + $0x88] sm:$0x3] %vm572, 0.0
        %590 = vst.msk [vmem:[#allocation2 + $0x90] sm:$0xff] %vm570, 0.0
        %591 = vst.msk [vmem:[#allocation2 + $0x98] sm:$0x3] %vm572, 0.0
        %s592 = scalar_lea.vmem [#allocation2], 16
        %593 = vst.msk [vmem:[%s592 + $0x1] sm:$0xff] %vm570, %v562
        %594 = vst.msk [vmem:[%s592 + $0x11] sm:$0xff] %vm570, %v563
        %595 = vst.msk [vmem:[%s592 + $0x21] sm:$0xff] %vm570, %v564
        %596 = vst.msk [vmem:[%s592 + $0x31] sm:$0xff] %vm570, %v565
        %597 = vst.msk [vmem:[%s592 + $0x41] sm:$0xff] %vm570, %v566
        %598 = vst.msk [vmem:[%s592 + $0x51] sm:$0xff] %vm570, %v567
        %599 = vst.msk [vmem:[%s592 + $0x61] sm:$0xff] %vm570, %v568
        %600 = vst.msk [vmem:[%s592 + $0x71] sm:$0xff] %vm570, %v569
        %v601 = vld [vmem:[#allocation2] sm:$0xff]
        %v602 = vld [vmem:[#allocation2 + $0x10] sm:$0xff]
        %v603 = vld [vmem:[#allocation2 + $0x20] sm:$0xff]
        %v604 = vld [vmem:[#allocation2 + $0x30] sm:$0xff]
        %v605 = vld [vmem:[#allocation2 + $0x40] sm:$0xff]
        %v606 = vld [vmem:[#allocation2 + $0x50] sm:$0xff]
        %v607 = vld [vmem:[#allocation2 + $0x60] sm:$0xff]
        %v608 = vld [vmem:[#allocation2 + $0x70] sm:$0xff]
        %v609 = vpack.c.bf16 %v602, %v601
        %v610 = vpack.c.bf16 %v604, %v603
        %v611 = vpack.c.bf16 %v606, %v605
        %v612 = vpack.c.bf16 %v608, %v607
        %v613 = vld [vmem:[#allocation6] sm:$0xf]
        %v614 = vld [vmem:[#allocation6 + $0x4] sm:$0xf]
        %v615 = vld [vmem:[#allocation2 + $0x1] sm:$0xff]
        %v616 = vld [vmem:[#allocation2 + $0x11] sm:$0xff]
        %v617 = vld [vmem:[#allocation2 + $0x21] sm:$0xff]
        %v618 = vld [vmem:[#allocation2 + $0x31] sm:$0xff]
        %v619 = vld [vmem:[#allocation2 + $0x41] sm:$0xff]
        %v620 = vld [vmem:[#allocation2 + $0x51] sm:$0xff]
        %v621 = vld [vmem:[#allocation2 + $0x61] sm:$0xff]
        %v622 = vld [vmem:[#allocation2 + $0x71] sm:$0xff]
        %v623 = vpack.c.bf16 %v616, %v615
        %v624 = vpack.c.bf16 %v618, %v617
        %v625 = vpack.c.bf16 %v620, %v619
        %v626 = vpack.c.bf16 %v622, %v621
        %s627 = scalar_lea.vmem [#allocation6], 8
        %v628 = vld [vmem:[%s627] sm:$0xf]
        %v629 = vld [vmem:[%s627 + $0x4] sm:$0xf]
        %v632 = vunpack.c.l.b16 %v628
        %v633 = vunpack.c.l.b16 %v629
        %v634 = vpack.c.b16 %v633, %v632
        %v637 = vsel %vm570, %v623, 0
        %v640 = vsel %vm570, %v624, 0
        %v643 = vsel %vm570, %v625, 0
        %v646 = vsel %vm570, %v626, 0
        %648 = vmatprep.subr.bf16.mxu0 0
        %649 = vmatpush1.bf16.msra.mxu0 %v634
        %650 = vmatprep.subr.bf16.mxu0 0
        %651 = vmatpush1.bf16.msra.mxu0 0
        %652 = vmatprep.subr.bf16.mxu0 0
        %653 = vmatpush1.bf16.msra.mxu0 0
        %654 = vmatprep.subr.bf16.mxu0 0
        %655 = vmatpush1.bf16.msra.mxu0 0
        %656 = vmatprep.subr.bf16.mxu0 0
        %657 = vmatpush1.bf16.msra.mxu0 0
        %658 = vmatprep.subr.bf16.mxu0 0
        %659 = vmatpush1.bf16.msra.mxu0 0
        %660 = vmatprep.subr.bf16.mxu0 0
        %661 = vmatpush1.bf16.msra.mxu0 0
        %662 = vmatprep.subr.bf16.mxu0 0
        %663 = vmatpush1.bf16.msra.mxu0 0
        %664 = vmatprep.subr.bf16.mxu0 0
        %665 = vmatpush1.bf16.msra.mxu0 0
        %666 = vmatprep.subr.bf16.mxu0 0
        %667 = vmatpush1.bf16.msra.mxu0 0
        %668 = vmatprep.subr.bf16.mxu0 0
        %669 = vmatpush1.bf16.msra.mxu0 0
        %670 = vmatprep.subr.bf16.mxu0 0
        %671 = vmatpush1.bf16.msra.mxu0 0
        %672 = vmatprep.subr.bf16.mxu0 0
        %673 = vmatpush1.bf16.msra.mxu0 0
        %674 = vmatprep.subr.bf16.mxu0 0
        %675 = vmatpush1.bf16.msra.mxu0 0
        %676 = vmatprep.subr.bf16.mxu0 0
        %677 = vmatpush1.bf16.msra.mxu0 0
        %678 = vmatprep.subr.bf16.mxu0 0
        %679 = vmatpush1.bf16.msra.mxu0 0
        %680 = vmatprep.mubr.bf16.mxu0 0
        %681 = vmatmul.mubr.bf16.gmra.mrb[0].mxu0 %v637
        %v682 = vpop.f32.mrb[0].mxu0
        %v683 = vadd.f32 0.0, %v682
        %v684 = vpop.f32.mrb[0].mxu0
        %v685 = vpop.f32.mrb[0].mxu0
        %v686 = vadd.f32 0.0, %v685
        %v687 = vpop.f32.mrb[0].mxu0
        %688 = vmatprep.mubr.bf16.mxu0 0
        %689 = vmatmul.mubr.bf16.gmra.mrb[0].mxu0 %v640
        %v690 = vpop.f32.mrb[0].mxu0
        %v691 = vadd.f32 0.0, %v690
        %v692 = vpop.f32.mrb[0].mxu0
        %v693 = vpop.f32.mrb[0].mxu0
        %v694 = vadd.f32 0.0, %v693
        %v695 = vpop.f32.mrb[0].mxu0
        %696 = vmatprep.mubr.bf16.mxu0 0
        %697 = vmatmul.mubr.bf16.gmra.mrb[0].mxu0 %v643
        %v698 = vpop.f32.mrb[0].mxu0
        %v699 = vadd.f32 0.0, %v698
        %v700 = vpop.f32.mrb[0].mxu0
        %v701 = vpop.f32.mrb[0].mxu0
        %v702 = vadd.f32 0.0, %v701
        %v703 = vpop.f32.mrb[0].mxu0
        %704 = vmatprep.mubr.bf16.mxu0 0
        %705 = vmatmul.mubr.bf16.gmra.mrb[0].mxu0 %v646
        %v706 = vpop.f32.mrb[0].mxu0
        %v707 = vadd.f32 0.0, %v706
        %v708 = vpop.f32.mrb[0].mxu0
        %v709 = vpop.f32.mrb[0].mxu0
        %v710 = vadd.f32 0.0, %v709
        %v711 = vpop.f32.mrb[0].mxu0
        %712 = vdwg.mxu0
        %v715 = vunpack.c.l.b16 %v613
        %v716 = vunpack.c.l.b16 %v614
        %v717 = vpack.c.b16 %v716, %v715
        %v720 = vsel %vm570, %v609, 0
        %v723 = vsel %vm570, %v610, 0
        %v726 = vsel %vm570, %v611, 0
        %v729 = vsel %vm570, %v612, 0
        %731 = vmatprep.subr.bf16.mxu0 0
        %732 = vmatpush1.bf16.msra.mxu0 %v717
        %733 = vmatprep.subr.bf16.mxu0 0
        %734 = vmatpush1.bf16.msra.mxu0 0
        %735 = vmatprep.subr.bf16.mxu0 0
        %736 = vmatpush1.bf16.msra.mxu0 0
        %737 = vmatprep.subr.bf16.mxu0 0
        %738 = vmatpush1.bf16.msra.mxu0 0
        %739 = vmatprep.subr.bf16.mxu0 0
        %740 = vmatpush1.bf16.msra.mxu0 0
        %741 = vmatprep.subr.bf16.mxu0 0
        %742 = vmatpush1.bf16.msra.mxu0 0
        %743 = vmatprep.subr.bf16.mxu0 0
        %744 = vmatpush1.bf16.msra.mxu0 0
        %745 = vmatprep.subr.bf16.mxu0 0
        %746 = vmatpush1.bf16.msra.mxu0 0
        %747 = vmatprep.subr.bf16.mxu0 0
        %748 = vmatpush1.bf16.msra.mxu0 0
        %749 = vmatprep.subr.bf16.mxu0 0
        %750 = vmatpush1.bf16.msra.mxu0 0
        %751 = vmatprep.subr.bf16.mxu0 0
        %752 = vmatpush1.bf16.msra.mxu0 0
        %753 = vmatprep.subr.bf16.mxu0 0
        %754 = vmatpush1.bf16.msra.mxu0 0
        %755 = vmatprep.subr.bf16.mxu0 0
        %756 = vmatpush1.bf16.msra.mxu0 0
        %757 = vmatprep.subr.bf16.mxu0 0
        %758 = vmatpush1.bf16.msra.mxu0 0
        %759 = vmatprep.subr.bf16.mxu0 0
        %760 = vmatpush1.bf16.msra.mxu0 0
        %761 = vmatprep.subr.bf16.mxu0 0
        %762 = vmatpush1.bf16.msra.mxu0 0
        %763 = vmatprep.mubr.bf16.mxu0 0
        %764 = vmatmul.mubr.bf16.gmra.mrb[0].mxu0 %v720
        %v765 = vpop.f32.mrb[0].mxu0
        %v766 = vadd.f32 %v683, %v765
        %v767 = vpop.f32.mrb[0].mxu0
        %v768 = vpop.f32.mrb[0].mxu0
        %v769 = vadd.f32 %v686, %v768
        %v770 = vpop.f32.mrb[0].mxu0
        %771 = vmatprep.mubr.bf16.mxu0 0
        %772 = vmatmul.mubr.bf16.gmra.mrb[0].mxu0 %v723
        %v773 = vpop.f32.mrb[0].mxu0
        %v774 = vadd.f32 %v691, %v773
        %v775 = vpop.f32.mrb[0].mxu0
        %v776 = vpop.f32.mrb[0].mxu0
        %v777 = vadd.f32 %v694, %v776
        %v778 = vpop.f32.mrb[0].mxu0
        %779 = vmatprep.mubr.bf16.mxu0 0
        %780 = vmatmul.mubr.bf16.gmra.mrb[0].mxu0 %v726
        %v781 = vpop.f32.mrb[0].mxu0
        %v782 = vadd.f32 %v699, %v781
        %v783 = vpop.f32.mrb[0].mxu0
        %v784 = vpop.f32.mrb[0].mxu0
        %v785 = vadd.f32 %v702, %v784
        %v786 = vpop.f32.mrb[0].mxu0
        %787 = vmatprep.mubr.bf16.mxu0 0
        %788 = vmatmul.mubr.bf16.gmra.mrb[0].mxu0 %v729
        %v789 = vpop.f32.mrb[0].mxu0
        %v790 = vadd.f32 %v707, %v789
        %v791 = vpop.f32.mrb[0].mxu0
        %v792 = vpop.f32.mrb[0].mxu0
        %v793 = vadd.f32 %v710, %v792
        %v794 = vpop.f32.mrb[0].mxu0
        %795 = vdwg.mxu0
        %v796 = vld [vmem:[#allocation2 + $0x2] sm:$0xff]
        %v797 = vld [vmem:[#allocation2 + $0x12] sm:$0xff]
        %v798 = vld [vmem:[#allocation2 + $0x22] sm:$0xff]
        %v799 = vld [vmem:[#allocation2 + $0x32] sm:$0xff]
        %v800 = vld [vmem:[#allocation2 + $0x42] sm:$0xff]
        %v801 = vld [vmem:[#allocation2 + $0x52] sm:$0xff]
        %v802 = vld [vmem:[#allocation2 + $0x62] sm:$0xff]
        %v803 = vld [vmem:[#allocation2 + $0x72] sm:$0xff]
        %v804 = vpack.c.bf16 %v797, %v796
        %v805 = vpack.c.bf16 %v799, %v798
        %v806 = vpack.c.bf16 %v801, %v800
        %v807 = vpack.c.bf16 %v803, %v802
        %s808 = scalar_lea.vmem [#allocation6], 16
        %v809 = vld [vmem:[%s808] sm:$0xf]
        %v810 = vld [vmem:[%s808 + $0x4] sm:$0xf]
        %v813 = vunpack.c.l.b16 %v809
        %v814 = vunpack.c.l.b16 %v810
        %v815 = vpack.c.b16 %v814, %v813
        %v818 = vsel %vm570, %v804, 0
        %v821 = vsel %vm570, %v805, 0
        %v824 = vsel %vm570, %v806, 0
        %v827 = vsel %vm570, %v807, 0
        %829 = vmatprep.subr.bf16.mxu0 0
        %830 = vmatpush1.bf16.msra.mxu0 %v815
        %831 = vmatprep.subr.bf16.mxu0 0
        %832 = vmatpush1.bf16.msra.mxu0 0
        %833 = vmatprep.subr.bf16.mxu0 0
        %834 = vmatpush1.bf16.msra.mxu0 0
        %835 = vmatprep.subr.bf16.mxu0 0
        %836 = vmatpush1.bf16.msra.mxu0 0
        %837 = vmatprep.subr.bf16.mxu0 0
        %838 = vmatpush1.bf16.msra.mxu0 0
        %839 = vmatprep.subr.bf16.mxu0 0
        %840 = vmatpush1.bf16.msra.mxu0 0
        %841 = vmatprep.subr.bf16.mxu0 0
        %842 = vmatpush1.bf16.msra.mxu0 0
        %843 = vmatprep.subr.bf16.mxu0 0
        %844 = vmatpush1.bf16.msra.mxu0 0
        %845 = vmatprep.subr.bf16.mxu0 0
        %846 = vmatpush1.bf16.msra.mxu0 0
        %847 = vmatprep.subr.bf16.mxu0 0
        %848 = vmatpush1.bf16.msra.mxu0 0
        %849 = vmatprep.subr.bf16.mxu0 0
        %850 = vmatpush1.bf16.msra.mxu0 0
        %851 = vmatprep.subr.bf16.mxu0 0
        %852 = vmatpush1.bf16.msra.mxu0 0
        %853 = vmatprep.subr.bf16.mxu0 0
        %854 = vmatpush1.bf16.msra.mxu0 0
        %855 = vmatprep.subr.bf16.mxu0 0
        %856 = vmatpush1.bf16.msra.mxu0 0
        %857 = vmatprep.subr.bf16.mxu0 0
        %858 = vmatpush1.bf16.msra.mxu0 0
        %859 = vmatprep.subr.bf16.mxu0 0
        %860 = vmatpush1.bf16.msra.mxu0 0
        %861 = vmatprep.mubr.bf16.mxu0 0
        %862 = vmatmul.mubr.bf16.gmra.mrb[0].mxu0 %v818
        %v863 = vpop.f32.mrb[0].mxu0
        %v864 = vadd.f32 0.0, %v863
        %v865 = vpop.f32.mrb[0].mxu0
        %v866 = vpop.f32.mrb[0].mxu0
        %v867 = vadd.f32 0.0, %v866
        %v868 = vpop.f32.mrb[0].mxu0
        %869 = vmatprep.mubr.bf16.mxu0 0
        %870 = vmatmul.mubr.bf16.gmra.mrb[0].mxu0 %v821
        %v871 = vpop.f32.mrb[0].mxu0
        %v872 = vadd.f32 0.0, %v871
        %v873 = vpop.f32.mrb[0].mxu0
        %v874 = vpop.f32.mrb[0].mxu0
        %v875 = vadd.f32 0.0, %v874
        %v876 = vpop.f32.mrb[0].mxu0
        %877 = vmatprep.mubr.bf16.mxu0 0
        %878 = vmatmul.mubr.bf16.gmra.mrb[0].mxu0 %v824
        %v879 = vpop.f32.mrb[0].mxu0
        %v880 = vadd.f32 0.0, %v879
        %v881 = vpop.f32.mrb[0].mxu0
        %v882 = vpop.f32.mrb[0].mxu0
        %v883 = vadd.f32 0.0, %v882
        %v884 = vpop.f32.mrb[0].mxu0
        %885 = vmatprep.mubr.bf16.mxu0 0
        %886 = vmatmul.mubr.bf16.gmra.mrb[0].mxu0 %v827
        %v887 = vpop.f32.mrb[0].mxu0
        %v888 = vadd.f32 0.0, %v887
        %v889 = vpop.f32.mrb[0].mxu0
        %v890 = vpop.f32.mrb[0].mxu0
        %v891 = vadd.f32 0.0, %v890
        %v892 = vpop.f32.mrb[0].mxu0
        %893 = vdwg.mxu0
        %v894 = vadd.f32 %v766, %v864
        %v895 = vadd.f32 %v769, %v867
        %v896 = vadd.f32 %v774, %v872
        %v897 = vadd.f32 %v777, %v875
        %v898 = vadd.f32 %v782, %v880
        %v899 = vadd.f32 %v785, %v883
        %v900 = vadd.f32 %v790, %v888
        %v901 = vadd.f32 %v793, %v891
        %v902 = vld [vmem:[%s592] sm:$0xff]
        %v903 = vld [vmem:[%s592 + $0x10] sm:$0xff]
        %v904 = vld [vmem:[%s592 + $0x20] sm:$0xff]
        %v905 = vld [vmem:[%s592 + $0x30] sm:$0xff]
        %v906 = vld [vmem:[%s592 + $0x40] sm:$0xff]
        %v907 = vld [vmem:[%s592 + $0x50] sm:$0xff]
        %v908 = vld [vmem:[%s592 + $0x60] sm:$0xff]
        %v909 = vld [vmem:[%s592 + $0x70] sm:$0xff]
        %v910 = vpack.c.bf16 %v903, %v902
        %v911 = vpack.c.bf16 %v905, %v904
        %v912 = vpack.c.bf16 %v907, %v906
        %v913 = vpack.c.bf16 %v909, %v908
        %s914 = scalar_lea.vmem [#allocation6], 24
        %v915 = vld [vmem:[%s914] sm:$0xf]
        %v916 = vld [vmem:[%s914 + $0x4] sm:$0xf]
        %v919 = vunpack.c.l.b16 %v915
        %v920 = vunpack.c.l.b16 %v916
        %v921 = vpack.c.b16 %v920, %v919
        %v924 = vsel %vm570, %v910, 0
        %v927 = vsel %vm570, %v911, 0
        %v930 = vsel %vm570, %v912, 0
        %v933 = vsel %vm570, %v913, 0
        %935 = vmatprep.subr.bf16.mxu0 0
        %936 = vmatpush1.bf16.msra.mxu0 %v921
        %937 = vmatprep.subr.bf16.mxu0 0
        %938 = vmatpush1.bf16.msra.mxu0 0
        %939 = vmatprep.subr.bf16.mxu0 0
        %940 = vmatpush1.bf16.msra.mxu0 0
        %941 = vmatprep.subr.bf16.mxu0 0
        %942 = vmatpush1.bf16.msra.mxu0 0
        %943 = vmatprep.subr.bf16.mxu0 0
        %944 = vmatpush1.bf16.msra.mxu0 0
        %945 = vmatprep.subr.bf16.mxu0 0
        %946 = vmatpush1.bf16.msra.mxu0 0
        %947 = vmatprep.subr.bf16.mxu0 0
        %948 = vmatpush1.bf16.msra.mxu0 0
        %949 = vmatprep.subr.bf16.mxu0 0
        %950 = vmatpush1.bf16.msra.mxu0 0
        %951 = vmatprep.subr.bf16.mxu0 0
        %952 = vmatpush1.bf16.msra.mxu0 0
        %953 = vmatprep.subr.bf16.mxu0 0
        %954 = vmatpush1.bf16.msra.mxu0 0
        %955 = vmatprep.subr.bf16.mxu0 0
        %956 = vmatpush1.bf16.msra.mxu0 0
        %957 = vmatprep.subr.bf16.mxu0 0
        %958 = vmatpush1.bf16.msra.mxu0 0
        %959 = vmatprep.subr.bf16.mxu0 0
        %960 = vmatpush1.bf16.msra.mxu0 0
        %961 = vmatprep.subr.bf16.mxu0 0
        %962 = vmatpush1.bf16.msra.mxu0 0
        %963 = vmatprep.subr.bf16.mxu0 0
        %964 = vmatpush1.bf16.msra.mxu0 0
        %965 = vmatprep.subr.bf16.mxu0 0
        %966 = vmatpush1.bf16.msra.mxu0 0
        %967 = vmatprep.mubr.bf16.mxu0 0
        %968 = vmatmul.mubr.bf16.gmra.mrb[0].mxu0 %v924
        %v969 = vpop.f32.mrb[0].mxu0
        %v970 = vadd.f32 0.0, %v969
        %v971 = vpop.f32.mrb[0].mxu0
        %v972 = vpop.f32.mrb[0].mxu0
        %v973 = vadd.f32 0.0, %v972
        %v974 = vpop.f32.mrb[0].mxu0
        %975 = vmatprep.mubr.bf16.mxu0 0
        %976 = vmatmul.mubr.bf16.gmra.mrb[0].mxu0 %v927
        %v977 = vpop.f32.mrb[0].mxu0
        %v978 = vadd.f32 0.0, %v977
        %v979 = vpop.f32.mrb[0].mxu0
        %v980 = vpop.f32.mrb[0].mxu0
        %v981 = vadd.f32 0.0, %v980
        %v982 = vpop.f32.mrb[0].mxu0
        %983 = vmatprep.mubr.bf16.mxu0 0
        %984 = vmatmul.mubr.bf16.gmra.mrb[0].mxu0 %v930
        %v985 = vpop.f32.mrb[0].mxu0
        %v986 = vadd.f32 0.0, %v985
        %v987 = vpop.f32.mrb[0].mxu0
        %v988 = vpop.f32.mrb[0].mxu0
        %v989 = vadd.f32 0.0, %v988
        %v990 = vpop.f32.mrb[0].mxu0
        %991 = vmatprep.mubr.bf16.mxu0 0
        %992 = vmatmul.mubr.bf16.gmra.mrb[0].mxu0 %v933
        %v993 = vpop.f32.mrb[0].mxu0
        %v994 = vadd.f32 0.0, %v993
        %v995 = vpop.f32.mrb[0].mxu0
        %v996 = vpop.f32.mrb[0].mxu0
        %v997 = vadd.f32 0.0, %v996
        %v998 = vpop.f32.mrb[0].mxu0
        %999 = vdwg.mxu0
        %v1000 = vadd.f32 %v894, %v970
        %v1001 = vadd.f32 %v895, %v973
        %v1002 = vadd.f32 %v896, %v978
        %v1003 = vadd.f32 %v897, %v981
        %v1004 = vadd.f32 %v898, %v986
        %v1005 = vadd.f32 %v899, %v989
        %v1006 = vadd.f32 %v900, %v994
        %v1007 = vadd.f32 %v901, %v997
        %v1008 = vld [vmem:[%s592 + $0x1] sm:$0xff]
        %v1009 = vld [vmem:[%s592 + $0x11] sm:$0xff]
        %v1010 = vld [vmem:[%s592 + $0x21] sm:$0xff]
        %v1011 = vld [vmem:[%s592 + $0x31] sm:$0xff]
        %v1012 = vld [vmem:[%s592 + $0x41] sm:$0xff]
        %v1013 = vld [vmem:[%s592 + $0x51] sm:$0xff]
        %v1014 = vld [vmem:[%s592 + $0x61] sm:$0xff]
        %v1015 = vld [vmem:[%s592 + $0x71] sm:$0xff]
        %v1016 = vpack.c.bf16 %v1009, %v1008
        %v1017 = vpack.c.bf16 %v1011, %v1010
        %v1018 = vpack.c.bf16 %v1013, %v1012
        %v1019 = vpack.c.bf16 %v1015, %v1014
        %s1020 = scalar_lea.vmem [#allocation6], 32
        %v1021 = vld [vmem:[%s1020] sm:$0xf]
        %v1022 = vld [vmem:[%s1020 + $0x4] sm:$0xf]
        %v1025 = vunpack.c.l.b16 %v1021
        %v1026 = vunpack.c.l.b16 %v1022
        %v1027 = vpack.c.b16 %v1026, %v1025
        %v1030 = vsel %vm570, %v1016, 0
        %v1033 = vsel %vm570, %v1017, 0
        %v1036 = vsel %vm570, %v1018, 0
        %v1039 = vsel %vm570, %v1019, 0
        %1041 = vmatprep.subr.bf16.mxu0 0
        %1042 = vmatpush1.bf16.msra.mxu0 %v1027
        %1043 = vmatprep.subr.bf16.mxu0 0
        %1044 = vmatpush1.bf16.msra.mxu0 0
        %1045 = vmatprep.subr.bf16.mxu0 0
        %1046 = vmatpush1.bf16.msra.mxu0 0
        %1047 = vmatprep.subr.bf16.mxu0 0
        %1048 = vmatpush1.bf16.msra.mxu0 0
        %1049 = vmatprep.subr.bf16.mxu0 0
        %1050 = vmatpush1.bf16.msra.mxu0 0
        %1051 = vmatprep.subr.bf16.mxu0 0
        %1052 = vmatpush1.bf16.msra.mxu0 0
        %1053 = vmatprep.subr.bf16.mxu0 0
        %1054 = vmatpush1.bf16.msra.mxu0 0
        %1055 = vmatprep.subr.bf16.mxu0 0
        %1056 = vmatpush1.bf16.msra.mxu0 0
        %1057 = vmatprep.subr.bf16.mxu0 0
        %1058 = vmatpush1.bf16.msra.mxu0 0
        %1059 = vmatprep.subr.bf16.mxu0 0
        %1060 = vmatpush1.bf16.msra.mxu0 0
        %1061 = vmatprep.subr.bf16.mxu0 0
        %1062 = vmatpush1.bf16.msra.mxu0 0
        %1063 = vmatprep.subr.bf16.mxu0 0
        %1064 = vmatpush1.bf16.msra.mxu0 0
        %1065 = vmatprep.subr.bf16.mxu0 0
        %1066 = vmatpush1.bf16.msra.mxu0 0
        %1067 = vmatprep.subr.bf16.mxu0 0
        %1068 = vmatpush1.bf16.msra.mxu0 0
        %1069 = vmatprep.subr.bf16.mxu0 0
        %1070 = vmatpush1.bf16.msra.mxu0 0
        %1071 = vmatprep.subr.bf16.mxu0 0
        %1072 = vmatpush1.bf16.msra.mxu0 0
        %1073 = vmatprep.mubr.bf16.mxu0 0
        %1074 = vmatmul.mubr.bf16.gmra.mrb[0].mxu0 %v1030
        %v1075 = vpop.f32.mrb[0].mxu0
        %v1076 = vadd.f32 0.0, %v1075
        %v1077 = vpop.f32.mrb[0].mxu0
        %v1078 = vpop.f32.mrb[0].mxu0
        %v1079 = vadd.f32 0.0, %v1078
        %v1080 = vpop.f32.mrb[0].mxu0
        %1081 = vmatprep.mubr.bf16.mxu0 0
        %1082 = vmatmul.mubr.bf16.gmra.mrb[0].mxu0 %v1033
        %v1083 = vpop.f32.mrb[0].mxu0
        %v1084 = vadd.f32 0.0, %v1083
        %v1085 = vpop.f32.mrb[0].mxu0
        %v1086 = vpop.f32.mrb[0].mxu0
        %v1087 = vadd.f32 0.0, %v1086
        %v1088 = vpop.f32.mrb[0].mxu0
        %1089 = vmatprep.mubr.bf16.mxu0 0
        %1090 = vmatmul.mubr.bf16.gmra.mrb[0].mxu0 %v1036
        %v1091 = vpop.f32.mrb[0].mxu0
        %v1092 = vadd.f32 0.0, %v1091
        %v1093 = vpop.f32.mrb[0].mxu0
        %v1094 = vpop.f32.mrb[0].mxu0
        %v1095 = vadd.f32 0.0, %v1094
        %v1096 = vpop.f32.mrb[0].mxu0
        %1097 = vmatprep.mubr.bf16.mxu0 0
        %1098 = vmatmul.mubr.bf16.gmra.mrb[0].mxu0 %v1039
        %v1099 = vpop.f32.mrb[0].mxu0
        %v1100 = vadd.f32 0.0, %v1099
        %v1101 = vpop.f32.mrb[0].mxu0
        %v1102 = vpop.f32.mrb[0].mxu0
        %v1103 = vadd.f32 0.0, %v1102
        %v1104 = vpop.f32.mrb[0].mxu0
        %1105 = vdwg.mxu0
        %v1106 = vadd.f32 %v1000, %v1076
        %v1107 = vadd.f32 %v1001, %v1079
        %v1108 = vadd.f32 %v1002, %v1084
        %v1109 = vadd.f32 %v1003, %v1087
        %v1110 = vadd.f32 %v1004, %v1092
        %v1111 = vadd.f32 %v1005, %v1095
        %v1112 = vadd.f32 %v1006, %v1100
        %v1113 = vadd.f32 %v1007, %v1103
        %v1114 = vld [vmem:[%s592 + $0x2] sm:$0xff]
        %v1115 = vld [vmem:[%s592 + $0x12] sm:$0xff]
        %v1116 = vld [vmem:[%s592 + $0x22] sm:$0xff]
        %v1117 = vld [vmem:[%s592 + $0x32] sm:$0xff]
        %v1118 = vld [vmem:[%s592 + $0x42] sm:$0xff]
        %v1119 = vld [vmem:[%s592 + $0x52] sm:$0xff]
        %v1120 = vld [vmem:[%s592 + $0x62] sm:$0xff]
        %v1121 = vld [vmem:[%s592 + $0x72] sm:$0xff]
        %v1122 = vpack.c.bf16 %v1115, %v1114
        %v1123 = vpack.c.bf16 %v1117, %v1116
        %v1124 = vpack.c.bf16 %v1119, %v1118
        %v1125 = vpack.c.bf16 %v1121, %v1120
        %s1126 = scalar_lea.vmem [#allocation6], 40
        %v1127 = vld [vmem:[%s1126] sm:$0xf]
        %v1128 = vld [vmem:[%s1126 + $0x4] sm:$0xf]
        %v1131 = vunpack.c.l.b16 %v1127
        %v1132 = vunpack.c.l.b16 %v1128
        %v1133 = vpack.c.b16 %v1132, %v1131
        %v1136 = vsel %vm570, %v1122, 0
        %v1139 = vsel %vm570, %v1123, 0
        %v1142 = vsel %vm570, %v1124, 0
        %v1145 = vsel %vm570, %v1125, 0
        %1147 = vmatprep.subr.bf16.mxu0 0
        %1148 = vmatpush1.bf16.msra.mxu0 %v1133
        %1149 = vmatprep.subr.bf16.mxu0 0
        %1150 = vmatpush1.bf16.msra.mxu0 0
        %1151 = vmatprep.subr.bf16.mxu0 0
        %1152 = vmatpush1.bf16.msra.mxu0 0
        %1153 = vmatprep.subr.bf16.mxu0 0
        %1154 = vmatpush1.bf16.msra.mxu0 0
        %1155 = vmatprep.subr.bf16.mxu0 0
        %1156 = vmatpush1.bf16.msra.mxu0 0
        %1157 = vmatprep.subr.bf16.mxu0 0
        %1158 = vmatpush1.bf16.msra.mxu0 0
        %1159 = vmatprep.subr.bf16.mxu0 0
        %1160 = vmatpush1.bf16.msra.mxu0 0
        %1161 = vmatprep.subr.bf16.mxu0 0
        %1162 = vmatpush1.bf16.msra.mxu0 0
        %1163 = vmatprep.subr.bf16.mxu0 0
        %1164 = vmatpush1.bf16.msra.mxu0 0
        %1165 = vmatprep.subr.bf16.mxu0 0
        %1166 = vmatpush1.bf16.msra.mxu0 0
        %1167 = vmatprep.subr.bf16.mxu0 0
        %1168 = vmatpush1.bf16.msra.mxu0 0
        %1169 = vmatprep.subr.bf16.mxu0 0
        %1170 = vmatpush1.bf16.msra.mxu0 0
        %1171 = vmatprep.subr.bf16.mxu0 0
        %1172 = vmatpush1.bf16.msra.mxu0 0
        %1173 = vmatprep.subr.bf16.mxu0 0
        %1174 = vmatpush1.bf16.msra.mxu0 0
        %1175 = vmatprep.subr.bf16.mxu0 0
        %1176 = vmatpush1.bf16.msra.mxu0 0
        %1177 = vmatprep.subr.bf16.mxu0 0
        %1178 = vmatpush1.bf16.msra.mxu0 0
        %1179 = vmatprep.mubr.bf16.mxu0 0
        %1180 = vmatmul.mubr.bf16.gmra.mrb[0].mxu0 %v1136
        %v1181 = vpop.f32.mrb[0].mxu0
        %v1182 = vadd.f32 0.0, %v1181
        %v1183 = vpop.f32.mrb[0].mxu0
        %v1184 = vpop.f32.mrb[0].mxu0
        %v1185 = vadd.f32 0.0, %v1184
        %v1186 = vpop.f32.mrb[0].mxu0
        %1187 = vmatprep.mubr.bf16.mxu0 0
        %1188 = vmatmul.mubr.bf16.gmra.mrb[0].mxu0 %v1139
        %v1189 = vpop.f32.mrb[0].mxu0
        %v1190 = vadd.f32 0.0, %v1189
        %v1191 = vpop.f32.mrb[0].mxu0
        %v1192 = vpop.f32.mrb[0].mxu0
        %v1193 = vadd.f32 0.0, %v1192
        %v1194 = vpop.f32.mrb[0].mxu0
        %1195 = vmatprep.mubr.bf16.mxu0 0
        %1196 = vmatmul.mubr.bf16.gmra.mrb[0].mxu0 %v1142
        %v1197 = vpop.f32.mrb[0].mxu0
        %v1198 = vadd.f32 0.0, %v1197
        %v1199 = vpop.f32.mrb[0].mxu0
        %v1200 = vpop.f32.mrb[0].mxu0
        %v1201 = vadd.f32 0.0, %v1200
        %v1202 = vpop.f32.mrb[0].mxu0
        %1203 = vmatprep.mubr.bf16.mxu0 0
        %1204 = vmatmul.mubr.bf16.gmra.mrb[0].mxu0 %v1145
        %v1205 = vpop.f32.mrb[0].mxu0
        %v1206 = vadd.f32 0.0, %v1205
        %v1207 = vpop.f32.mrb[0].mxu0
        %v1208 = vpop.f32.mrb[0].mxu0
        %v1209 = vadd.f32 0.0, %v1208
        %v1210 = vpop.f32.mrb[0].mxu0
        %1211 = vdwg.mxu0
        %v1212 = vadd.f32 %v1106, %v1182
        %v1213 = vadd.f32 %v1107, %v1185
        %v1214 = vadd.f32 %v1108, %v1190
        %v1215 = vadd.f32 %v1109, %v1193
        %v1216 = vadd.f32 %v1110, %v1198
        %v1217 = vadd.f32 %v1111, %v1201
        %v1218 = vadd.f32 %v1112, %v1206
        %v1219 = vadd.f32 %v1113, %v1209
        %s1220 = scalar_lea.vmem [#allocation2], 32
        %v1221 = vld [vmem:[%s1220] sm:$0xff]
        %v1222 = vld [vmem:[%s1220 + $0x10] sm:$0xff]
        %v1223 = vld [vmem:[%s1220 + $0x20] sm:$0xff]
        %v1224 = vld [vmem:[%s1220 + $0x30] sm:$0xff]
        %v1225 = vld [vmem:[%s1220 + $0x40] sm:$0xff]
        %v1226 = vld [vmem:[%s1220 + $0x50] sm:$0xff]
        %v1227 = vld [vmem:[%s1220 + $0x60] sm:$0xff]
        %v1228 = vld [vmem:[%s1220 + $0x70] sm:$0xff]
        %v1229 = vpack.c.bf16 %v1222, %v1221
        %v1230 = vpack.c.bf16 %v1224, %v1223
        %v1231 = vpack.c.bf16 %v1226, %v1225
        %v1232 = vpack.c.bf16 %v1228, %v1227
        %s1233 = scalar_lea.vmem [#allocation6], 48
        %v1234 = vld [vmem:[%s1233] sm:$0xf]
        %v1235 = vld [vmem:[%s1233 + $0x4] sm:$0xf]
        %v1238 = vunpack.c.l.b16 %v1234
        %v1239 = vunpack.c.l.b16 %v1235
        %v1240 = vpack.c.b16 %v1239, %v1238
        %v1243 = vsel %vm570, %v1229, 0
        %v1246 = vsel %vm570, %v1230, 0
        %v1249 = vsel %vm570, %v1231, 0
        %v1252 = vsel %vm570, %v1232, 0
        %1254 = vmatprep.subr.bf16.mxu0 0
        %1255 = vmatpush1.bf16.msra.mxu0 %v1240
        %1256 = vmatprep.subr.bf16.mxu0 0
        %1257 = vmatpush1.bf16.msra.mxu0 0
        %1258 = vmatprep.subr.bf16.mxu0 0
        %1259 = vmatpush1.bf16.msra.mxu0 0
        %1260 = vmatprep.subr.bf16.mxu0 0
        %1261 = vmatpush1.bf16.msra.mxu0 0
        %1262 = vmatprep.subr.bf16.mxu0 0
        %1263 = vmatpush1.bf16.msra.mxu0 0
        %1264 = vmatprep.subr.bf16.mxu0 0
        %1265 = vmatpush1.bf16.msra.mxu0 0
        %1266 = vmatprep.subr.bf16.mxu0 0
        %1267 = vmatpush1.bf16.msra.mxu0 0
        %1268 = vmatprep.subr.bf16.mxu0 0
        %1269 = vmatpush1.bf16.msra.mxu0 0
        %1270 = vmatprep.subr.bf16.mxu0 0
        %1271 = vmatpush1.bf16.msra.mxu0 0
        %1272 = vmatprep.subr.bf16.mxu0 0
        %1273 = vmatpush1.bf16.msra.mxu0 0
        %1274 = vmatprep.subr.bf16.mxu0 0
        %1275 = vmatpush1.bf16.msra.mxu0 0
        %1276 = vmatprep.subr.bf16.mxu0 0
        %1277 = vmatpush1.bf16.msra.mxu0 0
        %1278 = vmatprep.subr.bf16.mxu0 0
        %1279 = vmatpush1.bf16.msra.mxu0 0
        %1280 = vmatprep.subr.bf16.mxu0 0
        %1281 = vmatpush1.bf16.msra.mxu0 0
        %1282 = vmatprep.subr.bf16.mxu0 0
        %1283 = vmatpush1.bf16.msra.mxu0 0
        %1284 = vmatprep.subr.bf16.mxu0 0
        %1285 = vmatpush1.bf16.msra.mxu0 0
        %1286 = vmatprep.mubr.bf16.mxu0 0
        %1287 = vmatmul.mubr.bf16.gmra.mrb[0].mxu0 %v1243
        %v1288 = vpop.f32.mrb[0].mxu0
        %v1289 = vadd.f32 0.0, %v1288
        %v1290 = vpop.f32.mrb[0].mxu0
        %v1291 = vpop.f32.mrb[0].mxu0
        %v1292 = vadd.f32 0.0, %v1291
        %v1293 = vpop.f32.mrb[0].mxu0
        %1294 = vmatprep.mubr.bf16.mxu0 0
        %1295 = vmatmul.mubr.bf16.gmra.mrb[0].mxu0 %v1246
        %v1296 = vpop.f32.mrb[0].mxu0
        %v1297 = vadd.f32 0.0, %v1296
        %v1298 = vpop.f32.mrb[0].mxu0
        %v1299 = vpop.f32.mrb[0].mxu0
        %v1300 = vadd.f32 0.0, %v1299
        %v1301 = vpop.f32.mrb[0].mxu0
        %1302 = vmatprep.mubr.bf16.mxu0 0
        %1303 = vmatmul.mubr.bf16.gmra.mrb[0].mxu0 %v1249
        %v1304 = vpop.f32.mrb[0].mxu0
        %v1305 = vadd.f32 0.0, %v1304
        %v1306 = vpop.f32.mrb[0].mxu0
        %v1307 = vpop.f32.mrb[0].mxu0
        %v1308 = vadd.f32 0.0, %v1307
        %v1309 = vpop.f32.mrb[0].mxu0
        %1310 = vmatprep.mubr.bf16.mxu0 0
        %1311 = vmatmul.mubr.bf16.gmra.mrb[0].mxu0 %v1252
        %v1312 = vpop.f32.mrb[0].mxu0
        %v1313 = vadd.f32 0.0, %v1312
        %v1314 = vpop.f32.mrb[0].mxu0
        %v1315 = vpop.f32.mrb[0].mxu0
        %v1316 = vadd.f32 0.0, %v1315
        %v1317 = vpop.f32.mrb[0].mxu0
        %1318 = vdwg.mxu0
        %v1319 = vadd.f32 %v1212, %v1289
        %v1320 = vadd.f32 %v1213, %v1292
        %v1321 = vadd.f32 %v1214, %v1297
        %v1322 = vadd.f32 %v1215, %v1300
        %v1323 = vadd.f32 %v1216, %v1305
        %v1324 = vadd.f32 %v1217, %v1308
        %v1325 = vadd.f32 %v1218, %v1313
        %v1326 = vadd.f32 %v1219, %v1316
        %v1327 = vld [vmem:[%s1220 + $0x1] sm:$0xff]
        %v1328 = vld [vmem:[%s1220 + $0x11] sm:$0xff]
        %v1329 = vld [vmem:[%s1220 + $0x21] sm:$0xff]
        %v1330 = vld [vmem:[%s1220 + $0x31] sm:$0xff]
        %v1331 = vld [vmem:[%s1220 + $0x41] sm:$0xff]
        %v1332 = vld [vmem:[%s1220 + $0x51] sm:$0xff]
        %v1333 = vld [vmem:[%s1220 + $0x61] sm:$0xff]
        %v1334 = vld [vmem:[%s1220 + $0x71] sm:$0xff]
        %v1335 = vpack.c.bf16 %v1328, %v1327
        %v1336 = vpack.c.bf16 %v1330, %v1329
        %v1337 = vpack.c.bf16 %v1332, %v1331
        %v1338 = vpack.c.bf16 %v1334, %v1333
        %s1339 = scalar_lea.vmem [#allocation6], 56
        %v1340 = vld [vmem:[%s1339] sm:$0xf]
        %v1341 = vld [vmem:[%s1339 + $0x4] sm:$0xf]
        %v1344 = vunpack.c.l.b16 %v1340
        %v1345 = vunpack.c.l.b16 %v1341
        %v1346 = vpack.c.b16 %v1345, %v1344
        %v1349 = vsel %vm570, %v1335, 0
        %v1352 = vsel %vm570, %v1336, 0
        %v1355 = vsel %vm570, %v1337, 0
        %v1358 = vsel %vm570, %v1338, 0
        %1360 = vmatprep.subr.bf16.mxu0 0
        %1361 = vmatpush1.bf16.msra.mxu0 %v1346
        %1362 = vmatprep.subr.bf16.mxu0 0
        %1363 = vmatpush1.bf16.msra.mxu0 0
        %1364 = vmatprep.subr.bf16.mxu0 0
        %1365 = vmatpush1.bf16.msra.mxu0 0
        %1366 = vmatprep.subr.bf16.mxu0 0
        %1367 = vmatpush1.bf16.msra.mxu0 0
        %1368 = vmatprep.subr.bf16.mxu0 0
        %1369 = vmatpush1.bf16.msra.mxu0 0
        %1370 = vmatprep.subr.bf16.mxu0 0
        %1371 = vmatpush1.bf16.msra.mxu0 0
        %1372 = vmatprep.subr.bf16.mxu0 0
        %1373 = vmatpush1.bf16.msra.mxu0 0
        %1374 = vmatprep.subr.bf16.mxu0 0
        %1375 = vmatpush1.bf16.msra.mxu0 0
        %1376 = vmatprep.subr.bf16.mxu0 0
        %1377 = vmatpush1.bf16.msra.mxu0 0
        %1378 = vmatprep.subr.bf16.mxu0 0
        %1379 = vmatpush1.bf16.msra.mxu0 0
        %1380 = vmatprep.subr.bf16.mxu0 0
        %1381 = vmatpush1.bf16.msra.mxu0 0
        %1382 = vmatprep.subr.bf16.mxu0 0
        %1383 = vmatpush1.bf16.msra.mxu0 0
        %1384 = vmatprep.subr.bf16.mxu0 0
        %1385 = vmatpush1.bf16.msra.mxu0 0
        %1386 = vmatprep.subr.bf16.mxu0 0
        %1387 = vmatpush1.bf16.msra.mxu0 0
        %1388 = vmatprep.subr.bf16.mxu0 0
        %1389 = vmatpush1.bf16.msra.mxu0 0
        %1390 = vmatprep.subr.bf16.mxu0 0
        %1391 = vmatpush1.bf16.msra.mxu0 0
        %1392 = vmatprep.mubr.bf16.mxu0 0
        %1393 = vmatmul.mubr.bf16.gmra.mrb[0].mxu0 %v1349
        %v1394 = vpop.f32.mrb[0].mxu0
        %v1395 = vadd.f32 0.0, %v1394
        %v1396 = vpop.f32.mrb[0].mxu0
        %v1397 = vpop.f32.mrb[0].mxu0
        %v1398 = vadd.f32 0.0, %v1397
        %v1399 = vpop.f32.mrb[0].mxu0
        %1400 = vmatprep.mubr.bf16.mxu0 0
        %1401 = vmatmul.mubr.bf16.gmra.mrb[0].mxu0 %v1352
        %v1402 = vpop.f32.mrb[0].mxu0
        %v1403 = vadd.f32 0.0, %v1402
        %v1404 = vpop.f32.mrb[0].mxu0
        %v1405 = vpop.f32.mrb[0].mxu0
        %v1406 = vadd.f32 0.0, %v1405
        %v1407 = vpop.f32.mrb[0].mxu0
        %1408 = vmatprep.mubr.bf16.mxu0 0
        %1409 = vmatmul.mubr.bf16.gmra.mrb[0].mxu0 %v1355
        %v1410 = vpop.f32.mrb[0].mxu0
        %v1411 = vadd.f32 0.0, %v1410
        %v1412 = vpop.f32.mrb[0].mxu0
        %v1413 = vpop.f32.mrb[0].mxu0
        %v1414 = vadd.f32 0.0, %v1413
        %v1415 = vpop.f32.mrb[0].mxu0
        %1416 = vmatprep.mubr.bf16.mxu0 0
        %1417 = vmatmul.mubr.bf16.gmra.mrb[0].mxu0 %v1358
        %v1418 = vpop.f32.mrb[0].mxu0
        %v1419 = vadd.f32 0.0, %v1418
        %v1420 = vpop.f32.mrb[0].mxu0
        %v1421 = vpop.f32.mrb[0].mxu0
        %v1422 = vadd.f32 0.0, %v1421
        %v1423 = vpop.f32.mrb[0].mxu0
        %1424 = vdwg.mxu0
        %v1425 = vadd.f32 %v1319, %v1395
        %v1426 = vadd.f32 %v1320, %v1398
        %v1427 = vadd.f32 %v1321, %v1403
        %v1428 = vadd.f32 %v1322, %v1406
        %v1429 = vadd.f32 %v1323, %v1411
        %v1430 = vadd.f32 %v1324, %v1414
        %v1431 = vadd.f32 %v1325, %v1419
        %v1432 = vadd.f32 %v1326, %v1422
        %v1433 = vld [vmem:[%s1220 + $0x2] sm:$0xff]
        %v1434 = vld [vmem:[%s1220 + $0x12] sm:$0xff]
        %v1435 = vld [vmem:[%s1220 + $0x22] sm:$0xff]
        %v1436 = vld [vmem:[%s1220 + $0x32] sm:$0xff]
        %v1437 = vld [vmem:[%s1220 + $0x42] sm:$0xff]
        %v1438 = vld [vmem:[%s1220 + $0x52] sm:$0xff]
        %v1439 = vld [vmem:[%s1220 + $0x62] sm:$0xff]
        %v1440 = vld [vmem:[%s1220 + $0x72] sm:$0xff]
        %v1441 = vpack.c.bf16 %v1434, %v1433
        %v1442 = vpack.c.bf16 %v1436, %v1435
        %v1443 = vpack.c.bf16 %v1438, %v1437
        %v1444 = vpack.c.bf16 %v1440, %v1439
        %s1445 = scalar_lea.vmem [#allocation6], 64
        %v1446 = vld [vmem:[%s1445] sm:$0xf]
        %v1447 = vld [vmem:[%s1445 + $0x4] sm:$0xf]
        %v1450 = vunpack.c.l.b16 %v1446
        %v1451 = vunpack.c.l.b16 %v1447
        %v1452 = vpack.c.b16 %v1451, %v1450
        %v1455 = vsel %vm570, %v1441, 0
        %v1458 = vsel %vm570, %v1442, 0
        %v1461 = vsel %vm570, %v1443, 0
        %v1464 = vsel %vm570, %v1444, 0
        %1466 = vmatprep.subr.bf16.mxu0 0
        %1467 = vmatpush1.bf16.msra.mxu0 %v1452
        %1468 = vmatprep.subr.bf16.mxu0 0
        %1469 = vmatpush1.bf16.msra.mxu0 0
        %1470 = vmatprep.subr.bf16.mxu0 0
        %1471 = vmatpush1.bf16.msra.mxu0 0
        %1472 = vmatprep.subr.bf16.mxu0 0
        %1473 = vmatpush1.bf16.msra.mxu0 0
        %1474 = vmatprep.subr.bf16.mxu0 0
        %1475 = vmatpush1.bf16.msra.mxu0 0
        %1476 = vmatprep.subr.bf16.mxu0 0
        %1477 = vmatpush1.bf16.msra.mxu0 0
        %1478 = vmatprep.subr.bf16.mxu0 0
        %1479 = vmatpush1.bf16.msra.mxu0 0
        %1480 = vmatprep.subr.bf16.mxu0 0
        %1481 = vmatpush1.bf16.msra.mxu0 0
        %1482 = vmatprep.subr.bf16.mxu0 0
        %1483 = vmatpush1.bf16.msra.mxu0 0
        %1484 = vmatprep.subr.bf16.mxu0 0
        %1485 = vmatpush1.bf16.msra.mxu0 0
        %1486 = vmatprep.subr.bf16.mxu0 0
        %1487 = vmatpush1.bf16.msra.mxu0 0
        %1488 = vmatprep.subr.bf16.mxu0 0
        %1489 = vmatpush1.bf16.msra.mxu0 0
        %1490 = vmatprep.subr.bf16.mxu0 0
        %1491 = vmatpush1.bf16.msra.mxu0 0
        %1492 = vmatprep.subr.bf16.mxu0 0
        %1493 = vmatpush1.bf16.msra.mxu0 0
        %1494 = vmatprep.subr.bf16.mxu0 0
        %1495 = vmatpush1.bf16.msra.mxu0 0
        %1496 = vmatprep.subr.bf16.mxu0 0
        %1497 = vmatpush1.bf16.msra.mxu0 0
        %1498 = vmatprep.mubr.bf16.mxu0 0
        %1499 = vmatmul.mubr.bf16.gmra.mrb[0].mxu0 %v1455
        %v1500 = vpop.f32.mrb[0].mxu0
        %v1501 = vadd.f32 0.0, %v1500
        %v1502 = vpop.f32.mrb[0].mxu0
        %v1503 = vpop.f32.mrb[0].mxu0
        %v1504 = vadd.f32 0.0, %v1503
        %v1505 = vpop.f32.mrb[0].mxu0
        %1506 = vmatprep.mubr.bf16.mxu0 0
        %1507 = vmatmul.mubr.bf16.gmra.mrb[0].mxu0 %v1458
        %v1508 = vpop.f32.mrb[0].mxu0
        %v1509 = vadd.f32 0.0, %v1508
        %v1510 = vpop.f32.mrb[0].mxu0
        %v1511 = vpop.f32.mrb[0].mxu0
        %v1512 = vadd.f32 0.0, %v1511
        %v1513 = vpop.f32.mrb[0].mxu0
        %1514 = vmatprep.mubr.bf16.mxu0 0
        %1515 = vmatmul.mubr.bf16.gmra.mrb[0].mxu0 %v1461
        %v1516 = vpop.f32.mrb[0].mxu0
        %v1517 = vadd.f32 0.0, %v1516
        %v1518 = vpop.f32.mrb[0].mxu0
        %v1519 = vpop.f32.mrb[0].mxu0
        %v1520 = vadd.f32 0.0, %v1519
        %v1521 = vpop.f32.mrb[0].mxu0
        %1522 = vmatprep.mubr.bf16.mxu0 0
        %1523 = vmatmul.mubr.bf16.gmra.mrb[0].mxu0 %v1464
        %v1524 = vpop.f32.mrb[0].mxu0
        %v1525 = vadd.f32 0.0, %v1524
        %v1526 = vpop.f32.mrb[0].mxu0
        %v1527 = vpop.f32.mrb[0].mxu0
        %v1528 = vadd.f32 0.0, %v1527
        %v1529 = vpop.f32.mrb[0].mxu0
        %1530 = vdwg.mxu0
        %v1531 = vadd.f32 %v1425, %v1501
        %v1532 = vadd.f32 %v1426, %v1504
        %v1533 = vadd.f32 %v1427, %v1509
        %v1534 = vadd.f32 %v1428, %v1512
        %v1535 = vadd.f32 %v1429, %v1517
        %v1536 = vadd.f32 %v1430, %v1520
        %v1537 = vadd.f32 %v1431, %v1525
        %v1538 = vadd.f32 %v1432, %v1528
        %v1539 = vld [vmem:[%s6] sm:$0x1]
        %v1541 = vlaneseq
        %v1542 = vshrl.u32 %v1541, 7
        %v1543 = vsub.s32 0, %v1542
        %v1544 = vrot.slane %v1539, %v1543
        %v1546 = vmul.f32 %v1531, %v1544
        %v1547 = vmul.f32 %v1532, %v1544
        %v1548 = vmul.f32 %v1533, %v1544
        %v1549 = vmul.f32 %v1534, %v1544
        %v1550 = vmul.f32 %v1535, %v1544
        %v1551 = vmul.f32 %v1536, %v1544
        %v1552 = vmul.f32 %v1537, %v1544
        %v1553 = vmul.f32 %v1538, %v1544
        %v1554 = vld [vmem:[%s7] sm:$0x1]
        %v1556 = vlaneseq
        %v1557 = vshrl.u32 %v1556, 7
        %v1558 = vsub.s32 0, %v1557
        %v1559 = vrot.slane %v1554, %v1558
        %v1561 = vadd.f32 %v1546, %v1559
        %v1562 = vadd.f32 %v1547, %v1559
        %v1563 = vadd.f32 %v1548, %v1559
        %v1564 = vadd.f32 %v1549, %v1559
        %v1565 = vadd.f32 %v1550, %v1559
        %v1566 = vadd.f32 %v1551, %v1559
        %v1567 = vadd.f32 %v1552, %v1559
        %v1568 = vadd.f32 %v1553, %v1559
        %v1569 = vmax.f32 %v1561, 0.0
        %v1570 = vmax.f32 %v1562, 0.0
        %v1571 = vmax.f32 %v1563, 0.0
        %v1572 = vmax.f32 %v1564, 0.0
        %v1573 = vmax.f32 %v1565, 0.0
        %v1574 = vmax.f32 %v1566, 0.0
        %v1575 = vmax.f32 %v1567, 0.0
        %v1576 = vmax.f32 %v1568, 0.0
        %v1577 = vpack.c.bf16 %v1570, %v1569
        %v1578 = vpack.c.bf16 %v1572, %v1571
        %v1579 = vpack.c.bf16 %v1574, %v1573
        %v1580 = vpack.c.bf16 %v1576, %v1575
        %v1581 = vld [vmem:[%s3] sm:$0xf]
        %v1582 = vld [vmem:[%s3 + $0x4] sm:$0xf]
        %v1585 = vunpack.c.l.b16 %v1581
        %v1586 = vunpack.c.l.b16 %v1582
        %v1587 = vpack.c.b16 %v1586, %v1585
        %v1590 = vsel %vm570, %v1577, 0
        %v1593 = vsel %vm570, %v1578, 0
        %v1596 = vsel %vm570, %v1579, 0
        %v1599 = vsel %vm570, %v1580, 0
        %1601 = vmatprep.subr.bf16.mxu0 0
        %1602 = vmatpush1.bf16.msra.mxu0 %v1587
        %1603 = vmatprep.subr.bf16.mxu0 0
        %1604 = vmatpush1.bf16.msra.mxu0 0
        %1605 = vmatprep.subr.bf16.mxu0 0
        %1606 = vmatpush1.bf16.msra.mxu0 0
        %1607 = vmatprep.subr.bf16.mxu0 0
        %1608 = vmatpush1.bf16.msra.mxu0 0
        %1609 = vmatprep.subr.bf16.mxu0 0
        %1610 = vmatpush1.bf16.msra.mxu0 0
        %1611 = vmatprep.subr.bf16.mxu0 0
        %1612 = vmatpush1.bf16.msra.mxu0 0
        %1613 = vmatprep.subr.bf16.mxu0 0
        %1614 = vmatpush1.bf16.msra.mxu0 0
        %1615 = vmatprep.subr.bf16.mxu0 0
        %1616 = vmatpush1.bf16.msra.mxu0 0
        %1617 = vmatprep.subr.bf16.mxu0 0
        %1618 = vmatpush1.bf16.msra.mxu0 0
        %1619 = vmatprep.subr.bf16.mxu0 0
        %1620 = vmatpush1.bf16.msra.mxu0 0
        %1621 = vmatprep.subr.bf16.mxu0 0
        %1622 = vmatpush1.bf16.msra.mxu0 0
        %1623 = vmatprep.subr.bf16.mxu0 0
        %1624 = vmatpush1.bf16.msra.mxu0 0
        %1625 = vmatprep.subr.bf16.mxu0 0
        %1626 = vmatpush1.bf16.msra.mxu0 0
        %1627 = vmatprep.subr.bf16.mxu0 0
        %1628 = vmatpush1.bf16.msra.mxu0 0
        %1629 = vmatprep.subr.bf16.mxu0 0
        %1630 = vmatpush1.bf16.msra.mxu0 0
        %1631 = vmatprep.subr.bf16.mxu0 0
        %1632 = vmatpush1.bf16.msra.mxu0 0
        %1633 = vmatprep.mubr.bf16.mxu0 0
        %1634 = vmatmul.mubr.bf16.gmra.mrb[0].mxu0 %v1590
        %v1635 = vpop.f32.mrb[0].mxu0
        %v1636 = vadd.f32 0.0, %v1635
        %v1637 = vpop.f32.mrb[0].mxu0
        %v1638 = vpop.f32.mrb[0].mxu0
        %v1639 = vadd.f32 0.0, %v1638
        %v1640 = vpop.f32.mrb[0].mxu0
        %1641 = vmatprep.mubr.bf16.mxu0 0
        %1642 = vmatmul.mubr.bf16.gmra.mrb[0].mxu0 %v1593
        %v1643 = vpop.f32.mrb[0].mxu0
        %v1644 = vadd.f32 0.0, %v1643
        %v1645 = vpop.f32.mrb[0].mxu0
        %v1646 = vpop.f32.mrb[0].mxu0
        %v1647 = vadd.f32 0.0, %v1646
        %v1648 = vpop.f32.mrb[0].mxu0
        %1649 = vmatprep.mubr.bf16.mxu0 0
        %1650 = vmatmul.mubr.bf16.gmra.mrb[0].mxu0 %v1596
        %v1651 = vpop.f32.mrb[0].mxu0
        %v1652 = vadd.f32 0.0, %v1651
        %v1653 = vpop.f32.mrb[0].mxu0
        %v1654 = vpop.f32.mrb[0].mxu0
        %v1655 = vadd.f32 0.0, %v1654
        %v1656 = vpop.f32.mrb[0].mxu0
        %1657 = vmatprep.mubr.bf16.mxu0 0
        %1658 = vmatmul.mubr.bf16.gmra.mrb[0].mxu0 %v1599
        %v1659 = vpop.f32.mrb[0].mxu0
        %v1660 = vadd.f32 0.0, %v1659
        %v1661 = vpop.f32.mrb[0].mxu0
        %v1662 = vpop.f32.mrb[0].mxu0
        %v1663 = vadd.f32 0.0, %v1662
        %v1664 = vpop.f32.mrb[0].mxu0
        %1665 = vdwg.mxu0
        %v1666 = vld [vmem:[%s8] sm:$0x1]
        %v1668 = vlaneseq
        %v1669 = vshrl.u32 %v1668, 7
        %v1670 = vsub.s32 0, %v1669
        %v1671 = vrot.slane %v1666, %v1670
        %v1673 = vmul.f32 %v1636, %v1671
        %v1674 = vmul.f32 %v1639, %v1671
        %v1675 = vmul.f32 %v1644, %v1671
        %v1676 = vmul.f32 %v1647, %v1671
        %v1677 = vmul.f32 %v1652, %v1671
        %v1678 = vmul.f32 %v1655, %v1671
        %v1679 = vmul.f32 %v1660, %v1671
        %v1680 = vmul.f32 %v1663, %v1671
        %v1681 = vld [vmem:[%s9] sm:$0x1]
        %v1683 = vlaneseq
        %v1684 = vshrl.u32 %v1683, 7
        %v1685 = vsub.s32 0, %v1684
        %v1686 = vrot.slane %v1681, %v1685
        %v1688 = vadd.f32 %v1673, %v1686
        %v1689 = vadd.f32 %v1674, %v1686
        %v1690 = vadd.f32 %v1675, %v1686
        %v1691 = vadd.f32 %v1676, %v1686
        %v1692 = vadd.f32 %v1677, %v1686
        %v1693 = vadd.f32 %v1678, %v1686
        %v1694 = vadd.f32 %v1679, %v1686
        %v1695 = vadd.f32 %v1680, %v1686
        %v1696 = vunpack.c.l.bf16 %v394
        %v1697 = vunpack.c.l.bf16 %v395
        %v1698 = vunpack.c.l.bf16 %v396
        %v1699 = vunpack.c.l.bf16 %v397
        %v1700 = vunpack.c.l.bf16 %v398
        %v1701 = vunpack.c.l.bf16 %v399
        %v1702 = vunpack.c.l.bf16 %v400
        %v1703 = vunpack.c.l.bf16 %v401
        %v1704 = vadd.f32 %v1688, %v1696
        %v1705 = vadd.f32 %v1689, %v1697
        %v1706 = vadd.f32 %v1690, %v1698
        %v1707 = vadd.f32 %v1691, %v1699
        %v1708 = vadd.f32 %v1692, %v1700
        %v1709 = vadd.f32 %v1693, %v1701
        %v1710 = vadd.f32 %v1694, %v1702
        %v1711 = vadd.f32 %v1695, %v1703
        %v1712 = vmax.f32 %v1704, 0.0
        %v1713 = vmax.f32 %v1705, 0.0
        %v1714 = vmax.f32 %v1706, 0.0
        %v1715 = vmax.f32 %v1707, 0.0
        %v1716 = vmax.f32 %v1708, 0.0
        %v1717 = vmax.f32 %v1709, 0.0
        %v1718 = vmax.f32 %v1710, 0.0
        %v1719 = vmax.f32 %v1711, 0.0
        %1720 = vst.msk [vmem:[%s392] sm:$0xff] %vm454, %v1712
        %1721 = vst.msk [vmem:[%s392 + $0x8] sm:$0xff] %vm454, %v1713
        %1722 = vst.msk [vmem:[%s392 + $0x10] sm:$0xff] %vm454, %v1714
        %1723 = vst.msk [vmem:[%s392 + $0x18] sm:$0xff] %vm454, %v1715
        %1724 = vst.msk [vmem:[%s392 + $0x20] sm:$0xff] %vm454, %v1716
        %1725 = vst.msk [vmem:[%s392 + $0x28] sm:$0xff] %vm454, %v1717
        %1726 = vst.msk [vmem:[%s392 + $0x30] sm:$0xff] %vm454, %v1718
        %1727 = vst.msk [vmem:[%s392 + $0x38] sm:$0xff] %vm454, %v1719
        %s1728 = sand.u32 %s251, 1
        %s1729 = scalar_lea.sflag [#allocation5], %s1728
        %s1730 = sand.u32 %s251, 1
        %s1731 = smul.addr %s1730, 64
        %s1732 = scalar_lea.vmem [#allocation8], %s1731
        // Predicated region
        $region69: #{tpu_custom_call.1} parent=59 // pred_check
          %p1733 = pneg %p261
        $region70: #{tpu_custom_call.1} parent=59 // pred_check_branch
          %1735 = sbr.rel (%p1733) target = $region72
        $region71: #{tpu_custom_call.1} parent=59 // pred_region
          %s1737 = ssub.s32 1024, 1024
          %1738 = vsyncadd %s1729, %s1737
          %s1739 = smul.addr %s28, 8
          %s1740 = smul.addr %s1739, 128
          %s1741 = scalar_lea.hbm %s10, %s1740
          %s1742 = sshll.u32 %s1732, 4
          %s1743 = int_to_ptr.vmem [resolvable:$true] %s1742
          %1748 = dma.vmem_to_hbm [thread:$0]  %s1743, 1024, %s1741, %s1729, 128, 128, 8
        $region72: #{tpu_custom_call.1} parent=59 // pred_fallthru
          _
      $region60: #{tpu_custom_call.1} parent=5 // pred_fallthru
        _
      %p1749 = scmp.le.s32.totalorder 2, %s23
      // Predicated region
      $region73: #{tpu_custom_call.1} parent=5 // pred_check
        %p1750 = pneg %p1749
      $region74: #{tpu_custom_call.1} parent=5 // pred_check_branch
        %1752 = sbr.rel (%p1750) target = $region76
      $region75: #{tpu_custom_call.1} parent=5 // pred_region
        %s1753 = ssub.s32 %s23, 2
        // Predicated region
        $region77: #{tpu_custom_call.1} parent=75 // pred_check
          %p1754 = pneg %p267
        $region78: #{tpu_custom_call.1} parent=75 // pred_check_branch
          %1756 = sbr.rel (%p1754) target = $region80
        $region79: #{tpu_custom_call.1} parent=75 // pred_region
          %s1757 = sand.u32 %s252, 1
          %s1758 = scalar_lea.sflag [#allocation5], %s1757
          %s1759 = sand.u32 %s252, 1
          %s1760 = smul.addr %s1759, 64
          %s1761 = scalar_lea.vmem [#allocation8], %s1760
          %1762 = dma.done %s1758, 1024
        $region80: #{tpu_custom_call.1} parent=75 // pred_fallthru
          _
      $region76: #{tpu_custom_call.1} parent=5 // pred_fallthru
        _
    $region6: #{tpu_custom_call.1} parent=1 // loop_footer
      %s27 = sadd.s32 1, %s23
    $region7: #{tpu_custom_call.1} parent=1 // loop_footer_branch
      %22 = sbr.rel target = $region3
    $region8: #{tpu_custom_call.1} parent=1 // loop_exit
      _
    %1763 = vsyncpa [#allocation4], 1
    %s1764 = scalar_lea.sflag [#allocation4], 1
    %1765 = vsyncpa %s1764, 1
    %1766 = vsyncpa [#allocation7], 1
    %1767 = vsyncpa [#allocation5], 1
    %s1768 = scalar_lea.sflag [#allocation5], 1
    %1769 = vsyncpa %s1768, 1

</llo_original>
